<compile_context>
chip_gen: v7x
topology: tpu7x:2x2x1
jax: 0.10.0
libtpu: 0.0.40
codegen_flags: <defaults>
</compile_context>

<pallas_src>
import math

import jax
import jax.numpy as jnp
from jax.experimental import pallas as pl
from jax.experimental.pallas import tpu as pltpu


def nu_mlp_kernel(xs_ref, xz_ref, xa_ref,
                  w1s_ref, w1z_ref, w1a_ref, b1_ref,
                  w2_ref, b2_ref, wnu_ref, bnu_ref,
                  out_ref):
    """Full Nu_NN MLP forward for one batch tile.

    xs_ref : [TB, Ds] bf16      w1s_ref: [Ds, H1] bf16
    xz_ref : [TB, Dz] bf16      w1z_ref: [Dz, H1] bf16
    xa_ref : [TB, Da] bf16      w1a_ref: [Da, H1] bf16
    b1_ref : [1, H1]  f32
    w2_ref : [H1, H2] bf16      b2_ref : [1, H2] f32
    wnu_ref: [1, H2]  f32       bnu_ref: [1, 1]  f32
    out_ref: [TB, 1]  f32
    """
    # Layer 1: "fused concat" -- three partial MXU matmuls, f32 accumulate.
    h = jnp.dot(xs_ref[...], w1s_ref[...], preferred_element_type=jnp.float32)
    h = h + jnp.dot(xz_ref[...], w1z_ref[...],
                    preferred_element_type=jnp.float32)
    h = h + jnp.dot(xa_ref[...], w1a_ref[...],
                    preferred_element_type=jnp.float32)
    h = jnp.maximum(h + b1_ref[...], 0.0)                      # ReLU, f32 VPU

    # Layer 2: bf16 MXU matmul, f32 accumulate.
    h = jnp.dot(h.astype(jnp.bfloat16), w2_ref[...],
                preferred_element_type=jnp.float32)
    h = jnp.maximum(h + b2_ref[...], 0.0)                      # ReLU, f32 VPU

    # Output layer (out_features=1): VPU multiply + lane reduction (XLU slot)
    # instead of an N=1 MXU matmul.
    nu = jnp.sum(h * wnu_ref[...], axis=-1, keepdims=True) + bnu_ref[...]
    out_ref[...] = nu.astype(out_ref.dtype)


def _round_up(x, m):
    return ((x + m - 1) // m) * m


def prepare_params(params, state_dim, num_z, action_dim):
    """Canonical f32 params (w1, b1, w2, b2, wnu, bnu) -> kernel layout:
    W1 split into state/z/action row blocks, matmul weights in bf16,
    biases and the VPU-side nu row vector in f32."""
    w1, b1, w2, b2, wnu, bnu = params
    w1s = w1[:state_dim].astype(jnp.bfloat16)
    w1z = w1[state_dim:state_dim + num_z].astype(jnp.bfloat16)
    w1a = w1[state_dim + num_z:].astype(jnp.bfloat16)
    return (w1s, w1z, w1a, b1.astype(jnp.float32),
            w2.astype(jnp.bfloat16), b2.astype(jnp.float32),
            wnu.T.astype(jnp.float32),          # [1, H2] row for the VPU
            bnu.astype(jnp.float32))


def nu_nn_forward(state, z, action, kparams, *, batch_tile=None):
    """Pallas-backed Nu_NN.forward (state_action=True, batched 2-D inputs)."""
    w1s, w1z, w1a, b1, w2, b2, wnu_row, bnu = kparams
    B = state.shape[0]
    ds, dz, da = state.shape[1], z.shape[1], action.shape[1]
    H1, H2 = w2.shape

    if batch_tile is None:
        # >=2 grid steps of 256 rows for large batches (DMA/compute pipelining
        # and v7x megacore sharding of the "parallel" axis); a single padded
        # tile for small batches where per-step overhead would dominate.
        batch_tile = 256 if B >= 512 else _round_up(B, 8)
    Bp = _round_up(B, batch_tile)

    # bf16 inputs: MXU-native operands, halves x HBM traffic.
    xs = state.astype(jnp.bfloat16)
    xz = z.astype(jnp.bfloat16)
    xa = action.astype(jnp.bfloat16)
    if Bp != B:
        pad = ((0, Bp - B), (0, 0))
        xs = jnp.pad(xs, pad)
        xz = jnp.pad(xz, pad)
        xa = jnp.pad(xa, pad)

    grid = (Bp // batch_tile,)
    tile = lambda d: pl.BlockSpec((batch_tile, d), lambda i: (i, 0))
    resident = lambda shape: pl.BlockSpec(shape, lambda i: (0, 0))

    out = pl.pallas_call(
        nu_mlp_kernel,
        out_shape=jax.ShapeDtypeStruct((Bp, 1), jnp.float32),
        grid_spec=pltpu.PrefetchScalarGridSpec(
            num_scalar_prefetch=0,
            grid=grid,
            in_specs=[
                tile(ds), tile(dz), tile(da),
                resident((ds, H1)), resident((dz, H1)), resident((da, H1)),
                resident((1, H1)),
                resident((H1, H2)), resident((1, H2)),
                resident((1, H2)), resident((1, 1)),
            ],
            out_specs=pl.BlockSpec((batch_tile, 1), lambda i: (i, 0)),
        ),
        compiler_params=pltpu.CompilerParams(
            dimension_semantics=("parallel",)),
    )(xs, xz, xa, w1s, w1z, w1a, b1, w2, b2, wnu_row, bnu)
    return out[:B]


def xavier_uniform(key, fan_in, fan_out):
    """torch.nn.init.xavier_uniform_ with gain=1, returned as [in, out]."""
    bound = math.sqrt(6.0 / (fan_in + fan_out))
    w = jax.random.uniform(key, (fan_out, fan_in), jnp.float32,
                           minval=-bound, maxval=bound)
    return w.T


def make_params(key, input_dim, hidden_layer_dim, bias_scale=0.0):
    """Nu_NN parameters: xavier weights; biases are zero (module default) or
    small random when bias_scale > 0 (used only to exercise the bias path)."""
    params = []
    d = input_dim
    dims = list(hidden_layer_dim) + [1]
    keys = jax.random.split(key, 2 * len(dims))
    for i, h in enumerate(dims):
        params.append(xavier_uniform(keys[2 * i], d, h))
        if bias_scale > 0.0:
            b = bias_scale * jax.random.normal(keys[2 * i + 1], (1, h),
                                               jnp.float32)
        else:
            b = jnp.zeros((1, h), jnp.float32)
        params.append(b)
        d = h
    return tuple(params)


def reference_forward(state, z, action, params):
    """Pure-JAX f32 reference of the PyTorch forward (non_lin = relu)."""
    x = jnp.concatenate([state, z, action], axis=1)
    w1, b1, w2, b2, wnu, bnu = params
    x = jax.nn.relu(x @ w1 + b1)
    x = jax.nn.relu(x @ w2 + b2)
    return x @ wnu + bnu


def reference_forward_bf16(state, z, action, params):
    """Reference mirroring the kernel's bf16-operand / f32-accumulate math."""
    w1, b1, w2, b2, wnu, bnu = params
    x = jnp.concatenate([state, z, action], axis=1).astype(jnp.bfloat16)
    h = jnp.dot(x, w1.astype(jnp.bfloat16),
                preferred_element_type=jnp.float32)
    h = jax.nn.relu(h + b1)
    h = jnp.dot(h.astype(jnp.bfloat16), w2.astype(jnp.bfloat16),
                preferred_element_type=jnp.float32)
    h = jax.nn.relu(h + b2)
    return jnp.sum(h * wnu.T, axis=-1, keepdims=True) + bnu


if __name__ == "__main__":
    # Shapes consistent with the module: state_dim=8, action_dim=4, num_z=4,
    # hidden_layer_dim=[32, 32], non_linearity=relu, xavier weights, zero bias.
    state_dim, action_dim, num_z = 8, 4, 4
    hidden_layer_dim = [32, 32]
    batch = 512                       # -> batch_tile=256, grid=(2,)

    key = jax.random.PRNGKey(0)
    k_s, k_z, k_a, k_p = jax.random.split(key, 4)
    state = jax.random.normal(k_s, (batch, state_dim), jnp.float32)
    z = jax.random.normal(k_z, (batch, num_z), jnp.float32)
    action = jax.random.normal(k_a, (batch, action_dim), jnp.float32)

    input_dim = state_dim + num_z + action_dim   # state_action=True
    # bias_scale>0 only so the correctness check exercises the bias adds;
    # the module's 'zero' bias initializer corresponds to bias_scale=0.
    params = make_params(k_p, input_dim, hidden_layer_dim, bias_scale=0.1)
    kparams = prepare_params(params, state_dim, num_z, action_dim)

    nu = jax.jit(nu_nn_forward)(state, z, action, kparams)
    jax.block_until_ready(nu)
    assert nu.shape == (batch, 1)

    # Tight check against a reference with matching bf16-matmul numerics.
    ref_bf16 = reference_forward_bf16(state, z, action, params)
    assert jnp.allclose(nu, ref_bf16, atol=5e-3, rtol=5e-3)
    # Loose check against the pure-f32 (PyTorch-equivalent) reference.
    ref_f32 = reference_forward(state, z, action, params)
    assert jnp.allclose(nu, ref_f32, atol=5e-2, rtol=5e-2)

    print("KERNEL_OK")
</pallas_src>

<mosaic_0001>
module attributes {stable_mosaic.version = 11 : i64} {
  func.func @nu_mlp_kernel(%arg0: i32, %arg1: memref<256x8xbf16, #tpu.memory_space<vmem>>, %arg2: memref<256x4xbf16, #tpu.memory_space<vmem>>, %arg3: memref<256x4xbf16, #tpu.memory_space<vmem>>, %arg4: memref<8x32xbf16, #tpu.memory_space<vmem>>, %arg5: memref<4x32xbf16, #tpu.memory_space<vmem>>, %arg6: memref<4x32xbf16, #tpu.memory_space<vmem>>, %arg7: memref<1x32xf32, #tpu.memory_space<vmem>>, %arg8: memref<32x32xbf16, #tpu.memory_space<vmem>>, %arg9: memref<1x32xf32, #tpu.memory_space<vmem>>, %arg10: memref<1x32xf32, #tpu.memory_space<vmem>>, %arg11: memref<1x1xf32, #tpu.memory_space<vmem>>, %arg12: memref<256x1xf32, #tpu.memory_space<vmem>>) attributes {dimension_semantics = [#tpu.dimension_semantics<parallel>], iteration_bounds = array<i64: 2>, scalar_prefetch = 0 : i64, scratch_operands = 0 : i64, tpu.core_type = #tpu.core_type<tc>, window_params = [{transform_indices = @transform_0, window_bounds = array<i64: 256, 8>}, {transform_indices = @transform_1, window_bounds = array<i64: 256, 4>}, {transform_indices = @transform_2, window_bounds = array<i64: 256, 4>}, {pipeline_mode = #tpu.pipeline_mode<synchronous>, transform_indices = @transform_3, window_bounds = array<i64: 8, 32>}, {pipeline_mode = #tpu.pipeline_mode<synchronous>, transform_indices = @transform_4, window_bounds = array<i64: 4, 32>}, {pipeline_mode = #tpu.pipeline_mode<synchronous>, transform_indices = @transform_5, window_bounds = array<i64: 4, 32>}, {pipeline_mode = #tpu.pipeline_mode<synchronous>, transform_indices = @transform_6, window_bounds = array<i64: 1, 32>}, {pipeline_mode = #tpu.pipeline_mode<synchronous>, transform_indices = @transform_7, window_bounds = array<i64: 32, 32>}, {pipeline_mode = #tpu.pipeline_mode<synchronous>, transform_indices = @transform_8, window_bounds = array<i64: 1, 32>}, {pipeline_mode = #tpu.pipeline_mode<synchronous>, transform_indices = @transform_9, window_bounds = array<i64: 1, 32>}, {pipeline_mode = #tpu.pipeline_mode<synchronous>, transform_indices = @transform_10, window_bounds = array<i64: 1, 1>}, {transform_indices = @transform_11, window_bounds = array<i64: 256, 1>}]} {
    %c0 = arith.constant 0 : index
    %c0_0 = arith.constant 0 : index
    %0 = vector.load %arg1[%c0, %c0_0] : memref<256x8xbf16, #tpu.memory_space<vmem>>, vector<256x8xbf16>
    %c0_1 = arith.constant 0 : index
    %c0_2 = arith.constant 0 : index
    %1 = vector.load %arg4[%c0_1, %c0_2] : memref<8x32xbf16, #tpu.memory_space<vmem>>, vector<8x32xbf16>
    %cst = arith.constant dense<0.000000e+00> : vector<256x32xf32>
    %2 = tpu.matmul %0, %1, %cst {dimension_numbers = #tpu.dot_dimension_numbers<[1], [0], [0], [1], [0, 0, 1, 1], [], []>} : vector<256x8xbf16>, vector<8x32xbf16>, vector<256x32xf32> -> vector<256x32xf32>
    %c0_3 = arith.constant 0 : index
    %c0_4 = arith.constant 0 : index
    %3 = vector.load %arg2[%c0_3, %c0_4] : memref<256x4xbf16, #tpu.memory_space<vmem>>, vector<256x4xbf16>
    %c0_5 = arith.constant 0 : index
    %c0_6 = arith.constant 0 : index
    %4 = vector.load %arg5[%c0_5, %c0_6] : memref<4x32xbf16, #tpu.memory_space<vmem>>, vector<4x32xbf16>
    %cst_7 = arith.constant dense<0.000000e+00> : vector<256x32xf32>
    %5 = tpu.matmul %3, %4, %cst_7 {dimension_numbers = #tpu.dot_dimension_numbers<[1], [0], [0], [1], [0, 0, 1, 1], [], []>} : vector<256x4xbf16>, vector<4x32xbf16>, vector<256x32xf32> -> vector<256x32xf32>
    %6 = arith.addf %2, %5 : vector<256x32xf32>
    %c0_8 = arith.constant 0 : index
    %c0_9 = arith.constant 0 : index
    %7 = vector.load %arg3[%c0_8, %c0_9] : memref<256x4xbf16, #tpu.memory_space<vmem>>, vector<256x4xbf16>
    %c0_10 = arith.constant 0 : index
    %c0_11 = arith.constant 0 : index
    %8 = vector.load %arg6[%c0_10, %c0_11] : memref<4x32xbf16, #tpu.memory_space<vmem>>, vector<4x32xbf16>
    %cst_12 = arith.constant dense<0.000000e+00> : vector<256x32xf32>
    %9 = tpu.matmul %7, %8, %cst_12 {dimension_numbers = #tpu.dot_dimension_numbers<[1], [0], [0], [1], [0, 0, 1, 1], [], []>} : vector<256x4xbf16>, vector<4x32xbf16>, vector<256x32xf32> -> vector<256x32xf32>
    %10 = arith.addf %6, %9 : vector<256x32xf32>
    %c0_13 = arith.constant 0 : index
    %c0_14 = arith.constant 0 : index
    %11 = vector.load %arg7[%c0_13, %c0_14] : memref<1x32xf32, #tpu.memory_space<vmem>>, vector<1x32xf32>
    %12 = vector.broadcast %11 : vector<1x32xf32> to vector<256x32xf32>
    %13 = arith.addf %10, %12 : vector<256x32xf32>
    %cst_15 = arith.constant 0.000000e+00 : f32
    %14 = vector.broadcast %cst_15 : f32 to vector<256x32xf32>
    %15 = arith.maximumf %13, %14 : vector<256x32xf32>
    %16 = arith.truncf %15 : vector<256x32xf32> to vector<256x32xbf16>
    %c0_16 = arith.constant 0 : index
    %c0_17 = arith.constant 0 : index
    %17 = vector.load %arg8[%c0_16, %c0_17] : memref<32x32xbf16, #tpu.memory_space<vmem>>, vector<32x32xbf16>
    %cst_18 = arith.constant dense<0.000000e+00> : vector<256x32xf32>
    %18 = tpu.matmul %16, %17, %cst_18 {dimension_numbers = #tpu.dot_dimension_numbers<[1], [0], [0], [1], [0, 0, 1, 1], [], []>} : vector<256x32xbf16>, vector<32x32xbf16>, vector<256x32xf32> -> vector<256x32xf32>
    %c0_19 = arith.constant 0 : index
    %c0_20 = arith.constant 0 : index
    %19 = vector.load %arg9[%c0_19, %c0_20] : memref<1x32xf32, #tpu.memory_space<vmem>>, vector<1x32xf32>
    %20 = vector.broadcast %19 : vector<1x32xf32> to vector<256x32xf32>
    %21 = arith.addf %18, %20 : vector<256x32xf32>
    %cst_21 = arith.constant 0.000000e+00 : f32
    %22 = vector.broadcast %cst_21 : f32 to vector<256x32xf32>
    %23 = arith.maximumf %21, %22 : vector<256x32xf32>
    %c0_22 = arith.constant 0 : index
    %c0_23 = arith.constant 0 : index
    %24 = vector.load %arg10[%c0_22, %c0_23] : memref<1x32xf32, #tpu.memory_space<vmem>>, vector<1x32xf32>
    %25 = vector.broadcast %24 : vector<1x32xf32> to vector<256x32xf32>
    %26 = arith.mulf %23, %25 : vector<256x32xf32>
    %cst_24 = arith.constant dense<0.000000e+00> : vector<256xf32>
    %27 = vector.multi_reduction <add>, %26, %cst_24 [1] : vector<256x32xf32> to vector<256xf32>
    %28 = vector.shape_cast %27 : vector<256xf32> to vector<256x1xf32>
    %c0_25 = arith.constant 0 : index
    %c0_26 = arith.constant 0 : index
    %29 = vector.load %arg11[%c0_25, %c0_26] : memref<1x1xf32, #tpu.memory_space<vmem>>, vector<1x1xf32>
    %30 = vector.broadcast %29 : vector<1x1xf32> to vector<256x1xf32>
    %31 = arith.addf %28, %30 : vector<256x1xf32>
    %c0_27 = arith.constant 0 : index
    %c0_28 = arith.constant 0 : index
    %32 = vector.load %arg12[%c0_27, %c0_28] : memref<256x1xf32, #tpu.memory_space<vmem>>, vector<256x1xf32>
    tpu.vector_store %arg12[%c0_27, %c0_28], %31 {strides = array<i32>} : memref<256x1xf32, #tpu.memory_space<vmem>>, vector<256x1xf32>,
    return
  }
  func.func @transform_0(%arg0: i32) -> (i32, i32) {
    %c0_i32 = arith.constant 0 : i32
    %c0_i32_0 = arith.constant 0 : i32
    return %arg0, %c0_i32 : i32, i32
  }
  func.func @transform_1(%arg0: i32) -> (i32, i32) {
    %c0_i32 = arith.constant 0 : i32
    %c0_i32_0 = arith.constant 0 : i32
    return %arg0, %c0_i32 : i32, i32
  }
  func.func @transform_2(%arg0: i32) -> (i32, i32) {
    %c0_i32 = arith.constant 0 : i32
    %c0_i32_0 = arith.constant 0 : i32
    return %arg0, %c0_i32 : i32, i32
  }
  func.func @transform_3(%arg0: i32) -> (i32, i32) {
    %c0_i32 = arith.constant 0 : i32
    %c0_i32_0 = arith.constant 0 : i32
    %c0_i32_1 = arith.constant 0 : i32
    return %c0_i32, %c0_i32_0 : i32, i32
  }
  func.func @transform_4(%arg0: i32) -> (i32, i32) {
    %c0_i32 = arith.constant 0 : i32
    %c0_i32_0 = arith.constant 0 : i32
    %c0_i32_1 = arith.constant 0 : i32
    return %c0_i32, %c0_i32_0 : i32, i32
  }
  func.func @transform_5(%arg0: i32) -> (i32, i32) {
    %c0_i32 = arith.constant 0 : i32
    %c0_i32_0 = arith.constant 0 : i32
    %c0_i32_1 = arith.constant 0 : i32
    return %c0_i32, %c0_i32_0 : i32, i32
  }
  func.func @transform_6(%arg0: i32) -> (i32, i32) {
    %c0_i32 = arith.constant 0 : i32
    %c0_i32_0 = arith.constant 0 : i32
    %c0_i32_1 = arith.constant 0 : i32
    return %c0_i32, %c0_i32_0 : i32, i32
  }
  func.func @transform_7(%arg0: i32) -> (i32, i32) {
    %c0_i32 = arith.constant 0 : i32
    %c0_i32_0 = arith.constant 0 : i32
    %c0_i32_1 = arith.constant 0 : i32
    return %c0_i32, %c0_i32_0 : i32, i32
  }
  func.func @transform_8(%arg0: i32) -> (i32, i32) {
    %c0_i32 = arith.constant 0 : i32
    %c0_i32_0 = arith.constant 0 : i32
    %c0_i32_1 = arith.constant 0 : i32
    return %c0_i32, %c0_i32_0 : i32, i32
  }
  func.func @transform_9(%arg0: i32) -> (i32, i32) {
    %c0_i32 = arith.constant 0 : i32
    %c0_i32_0 = arith.constant 0 : i32
    %c0_i32_1 = arith.constant 0 : i32
    return %c0_i32, %c0_i32_0 : i32, i32
  }
  func.func @transform_10(%arg0: i32) -> (i32, i32) {
    %c0_i32 = arith.constant 0 : i32
    %c0_i32_0 = arith.constant 0 : i32
    %c0_i32_1 = arith.constant 0 : i32
    return %c0_i32, %c0_i32_0 : i32, i32
  }
  func.func @transform_11(%arg0: i32) -> (i32, i32) {
    %c0_i32 = arith.constant 0 : i32
    %c0_i32_0 = arith.constant 0 : i32
    return %arg0, %c0_i32 : i32, i32
  }
}

</mosaic_0001>

<llo_original>
// kernel: nu_nn_forward.1
$region0: #{nu_nn_forward.1}
  #allocation0 [shape = 'u32[]', space=smem, size = 0x4, offset = 0x4, fixed_abs, tag = 'smem constant byte address 0x4 - core index']
  #allocation1 [shape = 'u32[144,128]{1,0:T(1,128)}', space=vmem, size = 0x12000, scoped, tag = 'internal scratch']
  #allocation2 [shape = 'f32[1,1]{1,0:T(1,128)S(1)}', space=vmem, size = 0x200, scoped, tag = 'scoped memory for nu_nn_forward.1']
  %s0 = inlined_call_operand.vmem [shape: bf16[512,8], index: 0, kind: input, shape index: {}]
  %s1 = inlined_call_operand.vmem [shape: bf16[512,4], index: 1, kind: input, shape index: {}]
  %s2 = inlined_call_operand.vmem [shape: bf16[512,4], index: 2, kind: input, shape index: {}]
  %s3 = inlined_call_operand.vmem [shape: bf16[8,32], index: 3, kind: input, shape index: {}]
  %s4 = inlined_call_operand.vmem [shape: bf16[4,32], index: 4, kind: input, shape index: {}]
  %s5 = inlined_call_operand.vmem [shape: bf16[4,32], index: 5, kind: input, shape index: {}]
  %s6 = inlined_call_operand.vmem [shape: f32[1,32], index: 6, kind: input, shape index: {}]
  %s7 = inlined_call_operand.vmem [shape: bf16[32,32], index: 7, kind: input, shape index: {}]
  %s8 = inlined_call_operand.vmem [shape: f32[1,32], index: 8, kind: input, shape index: {}]
  %s9 = inlined_call_operand.vmem [shape: f32[1,32], index: 9, kind: input, shape index: {}]
  %s10 = inlined_call_operand.<no memory space> [shape: f32[1,1], index: 10, kind: input, shape index: {}]
  %s11 = inlined_call_operand.vmem [shape: f32[512,1], index: 11, kind: output, shape index: {}]
  %s12 = sld [smem:[#allocation0]]
  $region77: #{nu_nn_forward.1} parent=0
    _
  %s14 = ssub.s32 1, %s12
  %s15 = scalar_select 0, %s14, %s12
  %v16 = vstv %s10
  %17 = vst [vmem:[#allocation2] sm:$0x1] %v16
  loop: start=0, step=1, limit=4
  $region2: #{nu_nn_forward.1} parent=0 // loop_pre_header
    _
  $region3: #{nu_nn_forward.1} parent=0 // loop_header
    %s19 = sphi 0, %s23
    %p20 = scmp.ge.s32.totalorder %s19, 4
    %s29 = sphi 0, %s31
    %s32 = sphi 0, %s29
    %s33 = sphi 0, %s32
    %s49 = sphi 0, %s33
    %s55 = sphi 0, %s57
    %s58 = sphi 0, %s55
    %s59 = sphi 0, %s58
    %s75 = sphi 0, %s59
    %s81 = sphi 0, %s83
    %s84 = sphi 0, %s81
    %s85 = sphi 0, %s84
    %s101 = sphi 0, %s85
    %s105 = sphi 0, %s105
    %s107 = sphi 0, %s105
    %s108 = sphi 0, %s107
    %s122 = sphi 0, %s108
    %s126 = sphi 0, %s126
    %s128 = sphi 0, %s126
    %s129 = sphi 0, %s128
    %s143 = sphi 0, %s129
    %s147 = sphi 0, %s147
    %s149 = sphi 0, %s147
    %s150 = sphi 0, %s149
    %s164 = sphi 0, %s150
    %s168 = sphi 0, %s168
    %s170 = sphi 0, %s168
    %s171 = sphi 0, %s170
    %s185 = sphi 0, %s171
    %s189 = sphi 0, %s189
    %s191 = sphi 0, %s189
    %s192 = sphi 0, %s191
    %s206 = sphi 0, %s192
    %s210 = sphi 0, %s210
    %s212 = sphi 0, %s210
    %s213 = sphi 0, %s212
    %s227 = sphi 0, %s213
    %s231 = sphi 0, %s231
    %s233 = sphi 0, %s231
    %s234 = sphi 0, %s233
    %s248 = sphi 0, %s234
    %s252 = sphi 0, %s252
    %s254 = sphi 0, %s252
    %s255 = sphi 0, %s254
    %s269 = sphi 0, %s255
    %s275 = sphi 0, %s277
    %s278 = sphi 0, %s275
    %s279 = sphi 0, %s278
    %s295 = sphi 0, %s279
  $region4: #{nu_nn_forward.1} parent=0 // loop_header_branch
    %22 = sbr.rel (%p20) target = $region8
  $region5: #{nu_nn_forward.1} parent=0 // loop_body
    %s24 = ssub.s32 %s19, 1
    %s25 = ssub.s32 %s19, 2
    %s26 = sadd.s32 %s19, 1
    %s27 = ssub.s32 %s19, %s26
    %p28 = scmp.eq.s32.totalorder %s27, 0
    %s30 = sadd.s32 %s29, 1
    %s31 = scalar_select %p28, %s29, %s30
    %p34 = pneg %p28
    %p35 = scmp.eq.s32.totalorder %s19, 1
    %p36 = por %p34, %p35
    %p37 = scmp.ne.s32.totalorder %s29, %s32
    %p38 = scmp.eq.s32.totalorder %s19, 0
    %p39 = por %p37, %p38
    %p40 = scmp.ne.s32.totalorder %s29, %s32
    %p41 = scmp.eq.s32.totalorder %s24, 1
    %p42 = por %p40, %p41
    %p43 = scmp.ne.s32.totalorder %s32, %s33
    %p44 = scmp.eq.s32.totalorder %s24, 0
    %p45 = por %p43, %p44
    %p46 = scmp.ne.s32.totalorder %s32, %s33
    %p47 = scmp.eq.s32.totalorder %s25, 1
    %p48 = por %p46, %p47
    %p50 = scmp.ne.s32.totalorder %s33, %s49
    %p51 = scmp.eq.s32.totalorder %s25, 0
    %p52 = por %p50, %p51
    %s53 = ssub.s32 %s19, %s26
    %p54 = scmp.eq.s32.totalorder %s53, 0
    %s56 = sadd.s32 %s55, 1
    %s57 = scalar_select %p54, %s55, %s56
    %p60 = pneg %p54
    %p61 = scmp.eq.s32.totalorder %s19, 1
    %p62 = por %p60, %p61
    %p63 = scmp.ne.s32.totalorder %s55, %s58
    %p64 = scmp.eq.s32.totalorder %s19, 0
    %p65 = por %p63, %p64
    %p66 = scmp.ne.s32.totalorder %s55, %s58
    %p67 = scmp.eq.s32.totalorder %s24, 1
    %p68 = por %p66, %p67
    %p69 = scmp.ne.s32.totalorder %s58, %s59
    %p70 = scmp.eq.s32.totalorder %s24, 0
    %p71 = por %p69, %p70
    %p72 = scmp.ne.s32.totalorder %s58, %s59
    %p73 = scmp.eq.s32.totalorder %s25, 1
    %p74 = por %p72, %p73
    %p76 = scmp.ne.s32.totalorder %s59, %s75
    %p77 = scmp.eq.s32.totalorder %s25, 0
    %p78 = por %p76, %p77
    %s79 = ssub.s32 %s19, %s26
    %p80 = scmp.eq.s32.totalorder %s79, 0
    %s82 = sadd.s32 %s81, 1
    %s83 = scalar_select %p80, %s81, %s82
    %p86 = pneg %p80
    %p87 = scmp.eq.s32.totalorder %s19, 1
    %p88 = por %p86, %p87
    %p89 = scmp.ne.s32.totalorder %s81, %s84
    %p90 = scmp.eq.s32.totalorder %s19, 0
    %p91 = por %p89, %p90
    %p92 = scmp.ne.s32.totalorder %s81, %s84
    %p93 = scmp.eq.s32.totalorder %s24, 1
    %p94 = por %p92, %p93
    %p95 = scmp.ne.s32.totalorder %s84, %s85
    %p96 = scmp.eq.s32.totalorder %s24, 0
    %p97 = por %p95, %p96
    %p98 = scmp.ne.s32.totalorder %s84, %s85
    %p99 = scmp.eq.s32.totalorder %s25, 1
    %p100 = por %p98, %p99
    %p102 = scmp.ne.s32.totalorder %s85, %s101
    %p103 = scmp.eq.s32.totalorder %s25, 0
    %p104 = por %p102, %p103
    %s106 = sadd.s32 %s105, 1
    %p109 = scmp.eq.s32.totalorder %s19, 1
    %p110 = scmp.ne.s32.totalorder %s105, %s107
    %p111 = scmp.eq.s32.totalorder %s19, 0
    %p112 = por %p110, %p111
    %p113 = scmp.ne.s32.totalorder %s105, %s107
    %p114 = scmp.eq.s32.totalorder %s24, 1
    %p115 = por %p113, %p114
    %p116 = scmp.ne.s32.totalorder %s107, %s108
    %p117 = scmp.eq.s32.totalorder %s24, 0
    %p118 = por %p116, %p117
    %p119 = scmp.ne.s32.totalorder %s107, %s108
    %p120 = scmp.eq.s32.totalorder %s25, 1
    %p121 = por %p119, %p120
    %p123 = scmp.ne.s32.totalorder %s108, %s122
    %p124 = scmp.eq.s32.totalorder %s25, 0
    %p125 = por %p123, %p124
    %s127 = sadd.s32 %s126, 1
    %p130 = scmp.eq.s32.totalorder %s19, 1
    %p131 = scmp.ne.s32.totalorder %s126, %s128
    %p132 = scmp.eq.s32.totalorder %s19, 0
    %p133 = por %p131, %p132
    %p134 = scmp.ne.s32.totalorder %s126, %s128
    %p135 = scmp.eq.s32.totalorder %s24, 1
    %p136 = por %p134, %p135
    %p137 = scmp.ne.s32.totalorder %s128, %s129
    %p138 = scmp.eq.s32.totalorder %s24, 0
    %p139 = por %p137, %p138
    %p140 = scmp.ne.s32.totalorder %s128, %s129
    %p141 = scmp.eq.s32.totalorder %s25, 1
    %p142 = por %p140, %p141
    %p144 = scmp.ne.s32.totalorder %s129, %s143
    %p145 = scmp.eq.s32.totalorder %s25, 0
    %p146 = por %p144, %p145
    %s148 = sadd.s32 %s147, 1
    %p151 = scmp.eq.s32.totalorder %s19, 1
    %p152 = scmp.ne.s32.totalorder %s147, %s149
    %p153 = scmp.eq.s32.totalorder %s19, 0
    %p154 = por %p152, %p153
    %p155 = scmp.ne.s32.totalorder %s147, %s149
    %p156 = scmp.eq.s32.totalorder %s24, 1
    %p157 = por %p155, %p156
    %p158 = scmp.ne.s32.totalorder %s149, %s150
    %p159 = scmp.eq.s32.totalorder %s24, 0
    %p160 = por %p158, %p159
    %p161 = scmp.ne.s32.totalorder %s149, %s150
    %p162 = scmp.eq.s32.totalorder %s25, 1
    %p163 = por %p161, %p162
    %p165 = scmp.ne.s32.totalorder %s150, %s164
    %p166 = scmp.eq.s32.totalorder %s25, 0
    %p167 = por %p165, %p166
    %s169 = sadd.s32 %s168, 1
    %p172 = scmp.eq.s32.totalorder %s19, 1
    %p173 = scmp.ne.s32.totalorder %s168, %s170
    %p174 = scmp.eq.s32.totalorder %s19, 0
    %p175 = por %p173, %p174
    %p176 = scmp.ne.s32.totalorder %s168, %s170
    %p177 = scmp.eq.s32.totalorder %s24, 1
    %p178 = por %p176, %p177
    %p179 = scmp.ne.s32.totalorder %s170, %s171
    %p180 = scmp.eq.s32.totalorder %s24, 0
    %p181 = por %p179, %p180
    %p182 = scmp.ne.s32.totalorder %s170, %s171
    %p183 = scmp.eq.s32.totalorder %s25, 1
    %p184 = por %p182, %p183
    %p186 = scmp.ne.s32.totalorder %s171, %s185
    %p187 = scmp.eq.s32.totalorder %s25, 0
    %p188 = por %p186, %p187
    %s190 = sadd.s32 %s189, 1
    %p193 = scmp.eq.s32.totalorder %s19, 1
    %p194 = scmp.ne.s32.totalorder %s189, %s191
    %p195 = scmp.eq.s32.totalorder %s19, 0
    %p196 = por %p194, %p195
    %p197 = scmp.ne.s32.totalorder %s189, %s191
    %p198 = scmp.eq.s32.totalorder %s24, 1
    %p199 = por %p197, %p198
    %p200 = scmp.ne.s32.totalorder %s191, %s192
    %p201 = scmp.eq.s32.totalorder %s24, 0
    %p202 = por %p200, %p201
    %p203 = scmp.ne.s32.totalorder %s191, %s192
    %p204 = scmp.eq.s32.totalorder %s25, 1
    %p205 = por %p203, %p204
    %p207 = scmp.ne.s32.totalorder %s192, %s206
    %p208 = scmp.eq.s32.totalorder %s25, 0
    %p209 = por %p207, %p208
    %s211 = sadd.s32 %s210, 1
    %p214 = scmp.eq.s32.totalorder %s19, 1
    %p215 = scmp.ne.s32.totalorder %s210, %s212
    %p216 = scmp.eq.s32.totalorder %s19, 0
    %p217 = por %p215, %p216
    %p218 = scmp.ne.s32.totalorder %s210, %s212
    %p219 = scmp.eq.s32.totalorder %s24, 1
    %p220 = por %p218, %p219
    %p221 = scmp.ne.s32.totalorder %s212, %s213
    %p222 = scmp.eq.s32.totalorder %s24, 0
    %p223 = por %p221, %p222
    %p224 = scmp.ne.s32.totalorder %s212, %s213
    %p225 = scmp.eq.s32.totalorder %s25, 1
    %p226 = por %p224, %p225
    %p228 = scmp.ne.s32.totalorder %s213, %s227
    %p229 = scmp.eq.s32.totalorder %s25, 0
    %p230 = por %p228, %p229
    %s232 = sadd.s32 %s231, 1
    %p235 = scmp.eq.s32.totalorder %s19, 1
    %p236 = scmp.ne.s32.totalorder %s231, %s233
    %p237 = scmp.eq.s32.totalorder %s19, 0
    %p238 = por %p236, %p237
    %p239 = scmp.ne.s32.totalorder %s231, %s233
    %p240 = scmp.eq.s32.totalorder %s24, 1
    %p241 = por %p239, %p240
    %p242 = scmp.ne.s32.totalorder %s233, %s234
    %p243 = scmp.eq.s32.totalorder %s24, 0
    %p244 = por %p242, %p243
    %p245 = scmp.ne.s32.totalorder %s233, %s234
    %p246 = scmp.eq.s32.totalorder %s25, 1
    %p247 = por %p245, %p246
    %p249 = scmp.ne.s32.totalorder %s234, %s248
    %p250 = scmp.eq.s32.totalorder %s25, 0
    %p251 = por %p249, %p250
    %s253 = sadd.s32 %s252, 1
    %p256 = scmp.eq.s32.totalorder %s19, 1
    %p257 = scmp.ne.s32.totalorder %s252, %s254
    %p258 = scmp.eq.s32.totalorder %s19, 0
    %p259 = por %p257, %p258
    %p260 = scmp.ne.s32.totalorder %s252, %s254
    %p261 = scmp.eq.s32.totalorder %s24, 1
    %p262 = por %p260, %p261
    %p263 = scmp.ne.s32.totalorder %s254, %s255
    %p264 = scmp.eq.s32.totalorder %s24, 0
    %p265 = por %p263, %p264
    %p266 = scmp.ne.s32.totalorder %s254, %s255
    %p267 = scmp.eq.s32.totalorder %s25, 1
    %p268 = por %p266, %p267
    %p270 = scmp.ne.s32.totalorder %s255, %s269
    %p271 = scmp.eq.s32.totalorder %s25, 0
    %p272 = por %p270, %p271
    %s273 = ssub.s32 %s19, %s26
    %p274 = scmp.eq.s32.totalorder %s273, 0
    %s276 = sadd.s32 %s275, 1
    %s277 = scalar_select %p274, %s275, %s276
    %p280 = pneg %p274
    %p281 = scmp.eq.s32.totalorder %s19, 1
    %p282 = por %p280, %p281
    %p283 = scmp.ne.s32.totalorder %s275, %s278
    %p284 = scmp.eq.s32.totalorder %s19, 0
    %p285 = por %p283, %p284
    %p286 = scmp.ne.s32.totalorder %s275, %s278
    %p287 = scmp.eq.s32.totalorder %s24, 1
    %p288 = por %p286, %p287
    %p289 = scmp.ne.s32.totalorder %s278, %s279
    %p290 = scmp.eq.s32.totalorder %s24, 0
    %p291 = por %p289, %p290
    %p292 = scmp.ne.s32.totalorder %s278, %s279
    %p293 = scmp.eq.s32.totalorder %s25, 1
    %p294 = por %p292, %p293
    %p296 = scmp.ne.s32.totalorder %s279, %s295
    %p297 = scmp.eq.s32.totalorder %s25, 0
    %p298 = por %p296, %p297
    %p299 = scmp.le.s32.totalorder 1, %s19
    %p300 = scmp.lt.s32.totalorder %s19, 3
    %p301 = pnand %p299, %p300
    %p302 = pneg %p301
    // Predicated region
    $region9: #{nu_nn_forward.1} parent=5 // pred_check
      _
    $region10: #{nu_nn_forward.1} parent=5 // pred_check_branch
      %304 = sbr.rel (%p301) target = $region12
    $region11: #{nu_nn_forward.1} parent=5 // pred_region
      %s305 = ssub.s32 %s19, 1
      // Predicated region
      $region13: #{nu_nn_forward.1} parent=11 // pred_check
        %p306 = pneg %p118
      $region14: #{nu_nn_forward.1} parent=11 // pred_check_branch
        %308 = sbr.rel (%p306) target = $region16
      $region15: #{nu_nn_forward.1} parent=11 // pred_region
        _
      $region16: #{nu_nn_forward.1} parent=11 // pred_fallthru
        _
      // Predicated region
      $region17: #{nu_nn_forward.1} parent=11 // pred_check
        %p309 = pneg %p139
      $region18: #{nu_nn_forward.1} parent=11 // pred_check_branch
        %311 = sbr.rel (%p309) target = $region20
      $region19: #{nu_nn_forward.1} parent=11 // pred_region
        _
      $region20: #{nu_nn_forward.1} parent=11 // pred_fallthru
        _
      // Predicated region
      $region21: #{nu_nn_forward.1} parent=11 // pred_check
        %p312 = pneg %p160
      $region22: #{nu_nn_forward.1} parent=11 // pred_check_branch
        %314 = sbr.rel (%p312) target = $region24
      $region23: #{nu_nn_forward.1} parent=11 // pred_region
        _
      $region24: #{nu_nn_forward.1} parent=11 // pred_fallthru
        _
      // Predicated region
      $region25: #{nu_nn_forward.1} parent=11 // pred_check
        %p315 = pneg %p181
      $region26: #{nu_nn_forward.1} parent=11 // pred_check_branch
        %317 = sbr.rel (%p315) target = $region28
      $region27: #{nu_nn_forward.1} parent=11 // pred_region
        _
      $region28: #{nu_nn_forward.1} parent=11 // pred_fallthru
        _
      // Predicated region
      $region29: #{nu_nn_forward.1} parent=11 // pred_check
        %p318 = pneg %p202
      $region30: #{nu_nn_forward.1} parent=11 // pred_check_branch
        %320 = sbr.rel (%p318) target = $region32
      $region31: #{nu_nn_forward.1} parent=11 // pred_region
        _
      $region32: #{nu_nn_forward.1} parent=11 // pred_fallthru
        _
      // Predicated region
      $region33: #{nu_nn_forward.1} parent=11 // pred_check
        %p321 = pneg %p223
      $region34: #{nu_nn_forward.1} parent=11 // pred_check_branch
        %323 = sbr.rel (%p321) target = $region36
      $region35: #{nu_nn_forward.1} parent=11 // pred_region
        _
      $region36: #{nu_nn_forward.1} parent=11 // pred_fallthru
        _
      // Predicated region
      $region37: #{nu_nn_forward.1} parent=11 // pred_check
        %p324 = pneg %p244
      $region38: #{nu_nn_forward.1} parent=11 // pred_check_branch
        %326 = sbr.rel (%p324) target = $region40
      $region39: #{nu_nn_forward.1} parent=11 // pred_region
        _
      $region40: #{nu_nn_forward.1} parent=11 // pred_fallthru
        _
      // Predicated region
      $region41: #{nu_nn_forward.1} parent=11 // pred_check
        %p327 = pneg %p265
      $region42: #{nu_nn_forward.1} parent=11 // pred_check_branch
        %329 = sbr.rel (%p327) target = $region44
      $region43: #{nu_nn_forward.1} parent=11 // pred_region
        _
      $region44: #{nu_nn_forward.1} parent=11 // pred_fallthru
        _
    $region12: #{nu_nn_forward.1} parent=5 // pred_fallthru
      _
    %p330 = scmp.lt.s32.totalorder %s19, 2
    // Predicated region
    $region45: #{nu_nn_forward.1} parent=5 // pred_check
      %p331 = pneg %p330
    $region46: #{nu_nn_forward.1} parent=5 // pred_check_branch
      %333 = sbr.rel (%p331) target = $region48
    $region47: #{nu_nn_forward.1} parent=5 // pred_region
      // Predicated region
      $region49: #{nu_nn_forward.1} parent=47 // pred_check
        %p334 = pneg %p39
      $region50: #{nu_nn_forward.1} parent=47 // pred_check_branch
        %336 = sbr.rel (%p334) target = $region52
      $region51: #{nu_nn_forward.1} parent=47 // pred_region
        %s337 = smul.u32 32, %s19
        %p338 = scmp.lt.s32.totalorder %s337, 63
        %s339 = scalar_select %p338, %s337, 63
        %s340 = smul.addr %s339, 4
        %s341 = scalar_lea.vmem %s0, %s340
        %s342 = smul.u32 32, %s19
      $region52: #{nu_nn_forward.1} parent=47 // pred_fallthru
        _
      // Predicated region
      $region53: #{nu_nn_forward.1} parent=47 // pred_check
        %p343 = pneg %p65
      $region54: #{nu_nn_forward.1} parent=47 // pred_check_branch
        %345 = sbr.rel (%p343) target = $region56
      $region55: #{nu_nn_forward.1} parent=47 // pred_region
        %s346 = smul.u32 32, %s19
        %p347 = scmp.lt.s32.totalorder %s346, 63
        %s348 = scalar_select %p347, %s346, 63
        %s349 = smul.addr %s348, 4
        %s350 = scalar_lea.vmem %s1, %s349
        %s351 = smul.u32 32, %s19
      $region56: #{nu_nn_forward.1} parent=47 // pred_fallthru
        _
      // Predicated region
      $region57: #{nu_nn_forward.1} parent=47 // pred_check
        %p352 = pneg %p91
      $region58: #{nu_nn_forward.1} parent=47 // pred_check_branch
        %354 = sbr.rel (%p352) target = $region60
      $region59: #{nu_nn_forward.1} parent=47 // pred_region
        %s355 = smul.u32 32, %s19
        %p356 = scmp.lt.s32.totalorder %s355, 63
        %s357 = scalar_select %p356, %s355, 63
        %s358 = smul.addr %s357, 4
        %s359 = scalar_lea.vmem %s2, %s358
        %s360 = smul.u32 32, %s19
      $region60: #{nu_nn_forward.1} parent=47 // pred_fallthru
        _
    $region48: #{nu_nn_forward.1} parent=5 // pred_fallthru
      _
    %p361 = scmp.le.s32.totalorder 1, %s19
    %p362 = scmp.lt.s32.totalorder %s19, 3
    %p363 = pnand %p361, %p362
    %p364 = pneg %p363
    // Predicated region
    $region61: #{nu_nn_forward.1} parent=5 // pred_check
      _
    $region62: #{nu_nn_forward.1} parent=5 // pred_check_branch
      %366 = sbr.rel (%p363) target = $region64
    $region63: #{nu_nn_forward.1} parent=5 // pred_region
      %s367 = ssub.s32 %s19, 1
      %s368 = smul.u32 32, %s24
      %p369 = scmp.lt.s32.totalorder %s368, 63
      %s370 = scalar_select %p369, %s368, 63
      %s371 = smul.addr %s370, 4
      %s372 = scalar_lea.vmem %s0, %s371
      %p373 = pneg %p45
      %p374 = pneg %p42
      %s375 = smul.u32 32, %s24
      %p376 = scmp.lt.s32.totalorder %s375, 63
      %s377 = scalar_select %p376, %s375, 63
      %s378 = smul.addr %s377, 4
      %s379 = scalar_lea.vmem %s1, %s378
      %p380 = pneg %p71
      %p381 = pneg %p68
      %s382 = smul.u32 32, %s24
      %p383 = scmp.lt.s32.totalorder %s382, 63
      %s384 = scalar_select %p383, %s382, 63
      %s385 = smul.addr %s384, 4
      %s386 = scalar_lea.vmem %s2, %s385
      %p387 = pneg %p97
      %p388 = pneg %p94
      %p389 = pneg %p118
      %p390 = pneg %p115
      %p391 = pneg %p139
      %p392 = pneg %p136
      %p393 = pneg %p160
      %p394 = pneg %p157
      %p395 = pneg %p181
      %p396 = pneg %p178
      %p397 = pneg %p202
      %p398 = pneg %p199
      %p399 = pneg %p223
      %p400 = pneg %p220
      %p401 = pneg %p244
      %p402 = pneg %p241
      %p403 = pneg %p265
      %p404 = pneg %p262
      %p405 = pneg %p291
      %p406 = pneg %p288
      %s407 = smul.u32 32, %s24
      %p408 = scmp.lt.s32.totalorder %s407, 63
      %s409 = scalar_select %p408, %s407, 63
      %s410 = smul.addr %s409, 8
      %s411 = scalar_lea.vmem %s11, %s410
      %s412 = smul.u32 32, %s24
      %p413 = scmp.lt.s32.totalorder %s412, 63
      %s414 = scalar_select %p413, %s412, 63
      %s415 = smul.addr %s414, 4
      %s416 = scalar_lea.vmem %s0, %s415
      %s417 = smul.u32 32, %s24
      %s418 = smul.u32 32, %s24
      %p419 = scmp.lt.s32.totalorder %s418, 63
      %s420 = scalar_select %p419, %s418, 63
      %s421 = smul.addr %s420, 4
      %s422 = scalar_lea.vmem %s1, %s421
      %s423 = smul.u32 32, %s24
      %s424 = smul.u32 32, %s24
      %p425 = scmp.lt.s32.totalorder %s424, 63
      %s426 = scalar_select %p425, %s424, 63
      %s427 = smul.addr %s426, 4
      %s428 = scalar_lea.vmem %s2, %s427
      %s429 = smul.u32 32, %s24
      %s430 = smul.u32 32, %s24
      %p431 = scmp.lt.s32.totalorder %s430, 63
      %s432 = scalar_select %p431, %s430, 63
      %s433 = smul.addr %s432, 8
      %s434 = scalar_lea.vmem %s11, %s433
      %s435 = smul.u32 32, %s24
      %v437 = vld [vmem:[%s416] sm:$0xf]
      %v438 = vld [vmem:[%s416 + $0x4] sm:$0xf]
      %v439 = vld [vmem:[%s416 + $0x8] sm:$0xf]
      %v440 = vld [vmem:[%s416 + $0xc] sm:$0xf]
      %v441 = vld [vmem:[%s416 + $0x10] sm:$0xf]
      %v442 = vld [vmem:[%s416 + $0x14] sm:$0xf]
      %v443 = vld [vmem:[%s416 + $0x18] sm:$0xf]
      %v444 = vld [vmem:[%s416 + $0x1c] sm:$0xf]
      %v445 = vld [vmem:[%s416 + $0x20] sm:$0xf]
      %v446 = vld [vmem:[%s416 + $0x24] sm:$0xf]
      %v447 = vld [vmem:[%s416 + $0x28] sm:$0xf]
      %v448 = vld [vmem:[%s416 + $0x2c] sm:$0xf]
      %v449 = vld [vmem:[%s416 + $0x30] sm:$0xf]
      %v450 = vld [vmem:[%s416 + $0x34] sm:$0xf]
      %v451 = vld [vmem:[%s416 + $0x38] sm:$0xf]
      %v452 = vld [vmem:[%s416 + $0x3c] sm:$0xf]
      %v453 = vld [vmem:[%s416 + $0x40] sm:$0xf]
      %v454 = vld [vmem:[%s416 + $0x44] sm:$0xf]
      %v455 = vld [vmem:[%s416 + $0x48] sm:$0xf]
      %v456 = vld [vmem:[%s416 + $0x4c] sm:$0xf]
      %v457 = vld [vmem:[%s416 + $0x50] sm:$0xf]
      %v458 = vld [vmem:[%s416 + $0x54] sm:$0xf]
      %v459 = vld [vmem:[%s416 + $0x58] sm:$0xf]
      %v460 = vld [vmem:[%s416 + $0x5c] sm:$0xf]
      %v461 = vld [vmem:[%s416 + $0x60] sm:$0xf]
      %v462 = vld [vmem:[%s416 + $0x64] sm:$0xf]
      %v463 = vld [vmem:[%s416 + $0x68] sm:$0xf]
      %v464 = vld [vmem:[%s416 + $0x6c] sm:$0xf]
      %v465 = vld [vmem:[%s416 + $0x70] sm:$0xf]
      %v466 = vld [vmem:[%s416 + $0x74] sm:$0xf]
      %v467 = vld [vmem:[%s416 + $0x78] sm:$0xf]
      %v468 = vld [vmem:[%s416 + $0x7c] sm:$0xf]
      %v469 = vld [vmem:[%s3] sm:$0xf]
      %v470 = vld [vmem:[%s422] sm:$0xf]
      %v471 = vld [vmem:[%s422 + $0x4] sm:$0xf]
      %v472 = vld [vmem:[%s422 + $0x8] sm:$0xf]
      %v473 = vld [vmem:[%s422 + $0xc] sm:$0xf]
      %v474 = vld [vmem:[%s422 + $0x10] sm:$0xf]
      %v475 = vld [vmem:[%s422 + $0x14] sm:$0xf]
      %v476 = vld [vmem:[%s422 + $0x18] sm:$0xf]
      %v477 = vld [vmem:[%s422 + $0x1c] sm:$0xf]
      %v478 = vld [vmem:[%s422 + $0x20] sm:$0xf]
      %v479 = vld [vmem:[%s422 + $0x24] sm:$0xf]
      %v480 = vld [vmem:[%s422 + $0x28] sm:$0xf]
      %v481 = vld [vmem:[%s422 + $0x2c] sm:$0xf]
      %v482 = vld [vmem:[%s422 + $0x30] sm:$0xf]
      %v483 = vld [vmem:[%s422 + $0x34] sm:$0xf]
      %v484 = vld [vmem:[%s422 + $0x38] sm:$0xf]
      %v485 = vld [vmem:[%s422 + $0x3c] sm:$0xf]
      %v486 = vld [vmem:[%s422 + $0x40] sm:$0xf]
      %v487 = vld [vmem:[%s422 + $0x44] sm:$0xf]
      %v488 = vld [vmem:[%s422 + $0x48] sm:$0xf]
      %v489 = vld [vmem:[%s422 + $0x4c] sm:$0xf]
      %v490 = vld [vmem:[%s422 + $0x50] sm:$0xf]
      %v491 = vld [vmem:[%s422 + $0x54] sm:$0xf]
      %v492 = vld [vmem:[%s422 + $0x58] sm:$0xf]
      %v493 = vld [vmem:[%s422 + $0x5c] sm:$0xf]
      %v494 = vld [vmem:[%s422 + $0x60] sm:$0xf]
      %v495 = vld [vmem:[%s422 + $0x64] sm:$0xf]
      %v496 = vld [vmem:[%s422 + $0x68] sm:$0xf]
      %v497 = vld [vmem:[%s422 + $0x6c] sm:$0xf]
      %v498 = vld [vmem:[%s422 + $0x70] sm:$0xf]
      %v499 = vld [vmem:[%s422 + $0x74] sm:$0xf]
      %v500 = vld [vmem:[%s422 + $0x78] sm:$0xf]
      %v501 = vld [vmem:[%s422 + $0x7c] sm:$0xf]
      %v502 = vld [vmem:[%s4] sm:$0x3]
      %v535 = vunpack.c.l.b16 %v470
      %v536 = vunpack.c.l.b16 %v471
      %v537 = vunpack.c.l.b16 %v472
      %v538 = vunpack.c.l.b16 %v473
      %v539 = vunpack.c.l.b16 %v474
      %v540 = vunpack.c.l.b16 %v475
      %v541 = vunpack.c.l.b16 %v476
      %v542 = vunpack.c.l.b16 %v477
      %v543 = vunpack.c.l.b16 %v478
      %v544 = vunpack.c.l.b16 %v479
      %v545 = vunpack.c.l.b16 %v480
      %v546 = vunpack.c.l.b16 %v481
      %v547 = vunpack.c.l.b16 %v482
      %v548 = vunpack.c.l.b16 %v483
      %v549 = vunpack.c.l.b16 %v484
      %v550 = vunpack.c.l.b16 %v485
      %v551 = vunpack.c.l.b16 %v486
      %v552 = vunpack.c.l.b16 %v487
      %v553 = vunpack.c.l.b16 %v488
      %v554 = vunpack.c.l.b16 %v489
      %v555 = vunpack.c.l.b16 %v490
      %v556 = vunpack.c.l.b16 %v491
      %v557 = vunpack.c.l.b16 %v492
      %v558 = vunpack.c.l.b16 %v493
      %v559 = vunpack.c.l.b16 %v494
      %v560 = vunpack.c.l.b16 %v495
      %v561 = vunpack.c.l.b16 %v496
      %v562 = vunpack.c.l.b16 %v497
      %v563 = vunpack.c.l.b16 %v498
      %v564 = vunpack.c.l.b16 %v499
      %v565 = vunpack.c.l.b16 %v500
      %v566 = vunpack.c.l.b16 %v501
      %v567 = vpack.c.b16 %v536, %v535
      %v568 = vpack.c.b16 %v538, %v537
      %v569 = vpack.c.b16 %v540, %v539
      %v570 = vpack.c.b16 %v542, %v541
      %v571 = vpack.c.b16 %v544, %v543
      %v572 = vpack.c.b16 %v546, %v545
      %v573 = vpack.c.b16 %v548, %v547
      %v574 = vpack.c.b16 %v550, %v549
      %v575 = vpack.c.b16 %v552, %v551
      %v576 = vpack.c.b16 %v554, %v553
      %v577 = vpack.c.b16 %v556, %v555
      %v578 = vpack.c.b16 %v558, %v557
      %v579 = vpack.c.b16 %v560, %v559
      %v580 = vpack.c.b16 %v562, %v561
      %v581 = vpack.c.b16 %v564, %v563
      %v582 = vpack.c.b16 %v566, %v565
      %vm583 = vcmask 31744
      %v585 = vsel %vm583, %v567, 0
      %v588 = vsel %vm583, %v568, 0
      %v591 = vsel %vm583, %v569, 0
      %v594 = vsel %vm583, %v570, 0
      %v597 = vsel %vm583, %v571, 0
      %v600 = vsel %vm583, %v572, 0
      %v603 = vsel %vm583, %v573, 0
      %v606 = vsel %vm583, %v574, 0
      %v609 = vsel %vm583, %v575, 0
      %v612 = vsel %vm583, %v576, 0
      %v615 = vsel %vm583, %v577, 0
      %v618 = vsel %vm583, %v578, 0
      %v621 = vsel %vm583, %v579, 0
      %v624 = vsel %vm583, %v580, 0
      %v627 = vsel %vm583, %v581, 0
      %v630 = vsel %vm583, %v582, 0
      %vm632 = vcmask 1041408
      %v634 = vsel %vm632, %v502, 0
      %636 = vmatprep.subr.bf16.mxu0 0
      %637 = vmatpush1.bf16.msra.mxu0 %v634
      %638 = vmatprep.subr.bf16.mxu0 0
      %639 = vmatpush1.bf16.msra.mxu0 0
      %640 = vmatprep.subr.bf16.mxu0 0
      %641 = vmatpush1.bf16.msra.mxu0 0
      %642 = vmatprep.subr.bf16.mxu0 0
      %643 = vmatpush1.bf16.msra.mxu0 0
      %644 = vmatprep.subr.bf16.mxu0 0
      %645 = vmatpush1.bf16.msra.mxu0 0
      %646 = vmatprep.subr.bf16.mxu0 0
      %647 = vmatpush1.bf16.msra.mxu0 0
      %648 = vmatprep.subr.bf16.mxu0 0
      %649 = vmatpush1.bf16.msra.mxu0 0
      %650 = vmatprep.subr.bf16.mxu0 0
      %651 = vmatpush1.bf16.msra.mxu0 0
      %652 = vmatprep.subr.bf16.mxu0 0
      %653 = vmatpush1.bf16.msra.mxu0 0
      %654 = vmatprep.subr.bf16.mxu0 0
      %655 = vmatpush1.bf16.msra.mxu0 0
      %656 = vmatprep.subr.bf16.mxu0 0
      %657 = vmatpush1.bf16.msra.mxu0 0
      %658 = vmatprep.subr.bf16.mxu0 0
      %659 = vmatpush1.bf16.msra.mxu0 0
      %660 = vmatprep.subr.bf16.mxu0 0
      %661 = vmatpush1.bf16.msra.mxu0 0
      %662 = vmatprep.subr.bf16.mxu0 0
      %663 = vmatpush1.bf16.msra.mxu0 0
      %664 = vmatprep.subr.bf16.mxu0 0
      %665 = vmatpush1.bf16.msra.mxu0 0
      %666 = vmatprep.subr.bf16.mxu0 0
      %667 = vmatpush1.bf16.msra.mxu0 0
      %668 = vmatprep.mubr.bf16.mxu0 0
      %669 = vmatmul.mubr.bf16.gmra.mrb[0].mxu0 %v585
      %v670 = vpop.f32.mrb[0].mxu0
      %v671 = vadd.f32 0.0, %v670
      %v672 = vpop.f32.mrb[0].mxu0
      %v673 = vpop.f32.mrb[0].mxu0
      %v674 = vadd.f32 0.0, %v673
      %v675 = vpop.f32.mrb[0].mxu0
      %676 = vmatprep.mubr.bf16.mxu0 0
      %677 = vmatmul.mubr.bf16.gmra.mrb[0].mxu0 %v588
      %v678 = vpop.f32.mrb[0].mxu0
      %v679 = vadd.f32 0.0, %v678
      %v680 = vpop.f32.mrb[0].mxu0
      %v681 = vpop.f32.mrb[0].mxu0
      %v682 = vadd.f32 0.0, %v681
      %v683 = vpop.f32.mrb[0].mxu0
      %684 = vmatprep.mubr.bf16.mxu0 0
      %685 = vmatmul.mubr.bf16.gmra.mrb[0].mxu0 %v591
      %v686 = vpop.f32.mrb[0].mxu0
      %v687 = vadd.f32 0.0, %v686
      %v688 = vpop.f32.mrb[0].mxu0
      %v689 = vpop.f32.mrb[0].mxu0
      %v690 = vadd.f32 0.0, %v689
      %v691 = vpop.f32.mrb[0].mxu0
      %692 = vmatprep.mubr.bf16.mxu0 0
      %693 = vmatmul.mubr.bf16.gmra.mrb[0].mxu0 %v594
      %v694 = vpop.f32.mrb[0].mxu0
      %v695 = vadd.f32 0.0, %v694
      %v696 = vpop.f32.mrb[0].mxu0
      %v697 = vpop.f32.mrb[0].mxu0
      %v698 = vadd.f32 0.0, %v697
      %v699 = vpop.f32.mrb[0].mxu0
      %700 = vmatprep.mubr.bf16.mxu0 0
      %701 = vmatmul.mubr.bf16.gmra.mrb[0].mxu0 %v597
      %v702 = vpop.f32.mrb[0].mxu0
      %v703 = vadd.f32 0.0, %v702
      %v704 = vpop.f32.mrb[0].mxu0
      %v705 = vpop.f32.mrb[0].mxu0
      %v706 = vadd.f32 0.0, %v705
      %v707 = vpop.f32.mrb[0].mxu0
      %708 = vmatprep.mubr.bf16.mxu0 0
      %709 = vmatmul.mubr.bf16.gmra.mrb[0].mxu0 %v600
      %v710 = vpop.f32.mrb[0].mxu0
      %v711 = vadd.f32 0.0, %v710
      %v712 = vpop.f32.mrb[0].mxu0
      %v713 = vpop.f32.mrb[0].mxu0
      %v714 = vadd.f32 0.0, %v713
      %v715 = vpop.f32.mrb[0].mxu0
      %716 = vmatprep.mubr.bf16.mxu0 0
      %717 = vmatmul.mubr.bf16.gmra.mrb[0].mxu0 %v603
      %v718 = vpop.f32.mrb[0].mxu0
      %v719 = vadd.f32 0.0, %v718
      %v720 = vpop.f32.mrb[0].mxu0
      %v721 = vpop.f32.mrb[0].mxu0
      %v722 = vadd.f32 0.0, %v721
      %v723 = vpop.f32.mrb[0].mxu0
      %724 = vmatprep.mubr.bf16.mxu0 0
      %725 = vmatmul.mubr.bf16.gmra.mrb[0].mxu0 %v606
      %v726 = vpop.f32.mrb[0].mxu0
      %v727 = vadd.f32 0.0, %v726
      %v728 = vpop.f32.mrb[0].mxu0
      %v729 = vpop.f32.mrb[0].mxu0
      %v730 = vadd.f32 0.0, %v729
      %v731 = vpop.f32.mrb[0].mxu0
      %732 = vmatprep.mubr.bf16.mxu0 0
      %733 = vmatmul.mubr.bf16.gmra.mrb[0].mxu0 %v609
      %v734 = vpop.f32.mrb[0].mxu0
      %v735 = vadd.f32 0.0, %v734
      %v736 = vpop.f32.mrb[0].mxu0
      %v737 = vpop.f32.mrb[0].mxu0
      %v738 = vadd.f32 0.0, %v737
      %v739 = vpop.f32.mrb[0].mxu0
      %740 = vmatprep.mubr.bf16.mxu0 0
      %741 = vmatmul.mubr.bf16.gmra.mrb[0].mxu0 %v612
      %v742 = vpop.f32.mrb[0].mxu0
      %v743 = vadd.f32 0.0, %v742
      %v744 = vpop.f32.mrb[0].mxu0
      %v745 = vpop.f32.mrb[0].mxu0
      %v746 = vadd.f32 0.0, %v745
      %v747 = vpop.f32.mrb[0].mxu0
      %748 = vmatprep.mubr.bf16.mxu0 0
      %749 = vmatmul.mubr.bf16.gmra.mrb[0].mxu0 %v615
      %v750 = vpop.f32.mrb[0].mxu0
      %v751 = vadd.f32 0.0, %v750
      %v752 = vpop.f32.mrb[0].mxu0
      %v753 = vpop.f32.mrb[0].mxu0
      %v754 = vadd.f32 0.0, %v753
      %v755 = vpop.f32.mrb[0].mxu0
      %756 = vmatprep.mubr.bf16.mxu0 0
      %757 = vmatmul.mubr.bf16.gmra.mrb[0].mxu0 %v618
      %v758 = vpop.f32.mrb[0].mxu0
      %v759 = vadd.f32 0.0, %v758
      %v760 = vpop.f32.mrb[0].mxu0
      %v761 = vpop.f32.mrb[0].mxu0
      %v762 = vadd.f32 0.0, %v761
      %v763 = vpop.f32.mrb[0].mxu0
      %764 = vmatprep.mubr.bf16.mxu0 0
      %765 = vmatmul.mubr.bf16.gmra.mrb[0].mxu0 %v621
      %v766 = vpop.f32.mrb[0].mxu0
      %v767 = vadd.f32 0.0, %v766
      %v768 = vpop.f32.mrb[0].mxu0
      %v769 = vpop.f32.mrb[0].mxu0
      %v770 = vadd.f32 0.0, %v769
      %v771 = vpop.f32.mrb[0].mxu0
      %772 = vmatprep.mubr.bf16.mxu0 0
      %773 = vmatmul.mubr.bf16.gmra.mrb[0].mxu0 %v624
      %v774 = vpop.f32.mrb[0].mxu0
      %v775 = vadd.f32 0.0, %v774
      %v776 = vpop.f32.mrb[0].mxu0
      %v777 = vpop.f32.mrb[0].mxu0
      %v778 = vadd.f32 0.0, %v777
      %v779 = vpop.f32.mrb[0].mxu0
      %780 = vmatprep.mubr.bf16.mxu0 0
      %781 = vmatmul.mubr.bf16.gmra.mrb[0].mxu0 %v627
      %v782 = vpop.f32.mrb[0].mxu0
      %v783 = vadd.f32 0.0, %v782
      %v784 = vpop.f32.mrb[0].mxu0
      %v785 = vpop.f32.mrb[0].mxu0
      %v786 = vadd.f32 0.0, %v785
      %v787 = vpop.f32.mrb[0].mxu0
      %788 = vmatprep.mubr.bf16.mxu0 0
      %789 = vmatmul.mubr.bf16.gmra.mrb[0].mxu0 %v630
      %v790 = vpop.f32.mrb[0].mxu0
      %v791 = vadd.f32 0.0, %v790
      %v792 = vpop.f32.mrb[0].mxu0
      %v793 = vpop.f32.mrb[0].mxu0
      %v794 = vadd.f32 0.0, %v793
      %v795 = vpop.f32.mrb[0].mxu0
      %796 = vdwg.mxu0
      %v829 = vunpack.c.l.b16 %v437
      %v830 = vunpack.c.l.b16 %v438
      %v831 = vunpack.c.l.b16 %v439
      %v832 = vunpack.c.l.b16 %v440
      %v833 = vunpack.c.l.b16 %v441
      %v834 = vunpack.c.l.b16 %v442
      %v835 = vunpack.c.l.b16 %v443
      %v836 = vunpack.c.l.b16 %v444
      %v837 = vunpack.c.l.b16 %v445
      %v838 = vunpack.c.l.b16 %v446
      %v839 = vunpack.c.l.b16 %v447
      %v840 = vunpack.c.l.b16 %v448
      %v841 = vunpack.c.l.b16 %v449
      %v842 = vunpack.c.l.b16 %v450
      %v843 = vunpack.c.l.b16 %v451
      %v844 = vunpack.c.l.b16 %v452
      %v845 = vunpack.c.l.b16 %v453
      %v846 = vunpack.c.l.b16 %v454
      %v847 = vunpack.c.l.b16 %v455
      %v848 = vunpack.c.l.b16 %v456
      %v849 = vunpack.c.l.b16 %v457
      %v850 = vunpack.c.l.b16 %v458
      %v851 = vunpack.c.l.b16 %v459
      %v852 = vunpack.c.l.b16 %v460
      %v853 = vunpack.c.l.b16 %v461
      %v854 = vunpack.c.l.b16 %v462
      %v855 = vunpack.c.l.b16 %v463
      %v856 = vunpack.c.l.b16 %v464
      %v857 = vunpack.c.l.b16 %v465
      %v858 = vunpack.c.l.b16 %v466
      %v859 = vunpack.c.l.b16 %v467
      %v860 = vunpack.c.l.b16 %v468
      %v861 = vpack.c.b16 %v830, %v829
      %v862 = vpack.c.b16 %v832, %v831
      %v863 = vpack.c.b16 %v834, %v833
      %v864 = vpack.c.b16 %v836, %v835
      %v865 = vpack.c.b16 %v838, %v837
      %v866 = vpack.c.b16 %v840, %v839
      %v867 = vpack.c.b16 %v842, %v841
      %v868 = vpack.c.b16 %v844, %v843
      %v869 = vpack.c.b16 %v846, %v845
      %v870 = vpack.c.b16 %v848, %v847
      %v871 = vpack.c.b16 %v850, %v849
      %v872 = vpack.c.b16 %v852, %v851
      %v873 = vpack.c.b16 %v854, %v853
      %v874 = vpack.c.b16 %v856, %v855
      %v875 = vpack.c.b16 %v858, %v857
      %v876 = vpack.c.b16 %v860, %v859
      %vm877 = vcmask 64512
      %v879 = vsel %vm877, %v861, 0
      %v882 = vsel %vm877, %v862, 0
      %v885 = vsel %vm877, %v863, 0
      %v888 = vsel %vm877, %v864, 0
      %v891 = vsel %vm877, %v865, 0
      %v894 = vsel %vm877, %v866, 0
      %v897 = vsel %vm877, %v867, 0
      %v900 = vsel %vm877, %v868, 0
      %v903 = vsel %vm877, %v869, 0
      %v906 = vsel %vm877, %v870, 0
      %v909 = vsel %vm877, %v871, 0
      %v912 = vsel %vm877, %v872, 0
      %v915 = vsel %vm877, %v873, 0
      %v918 = vsel %vm877, %v874, 0
      %v921 = vsel %vm877, %v875, 0
      %v924 = vsel %vm877, %v876, 0
      %vm926 = vcmask 1043456
      %v928 = vsel %vm926, %v469, 0
      %930 = vmatprep.subr.bf16.mxu0 0
      %931 = vmatpush1.bf16.msra.mxu0 %v928
      %932 = vmatprep.subr.bf16.mxu0 0
      %933 = vmatpush1.bf16.msra.mxu0 0
      %934 = vmatprep.subr.bf16.mxu0 0
      %935 = vmatpush1.bf16.msra.mxu0 0
      %936 = vmatprep.subr.bf16.mxu0 0
      %937 = vmatpush1.bf16.msra.mxu0 0
      %938 = vmatprep.subr.bf16.mxu0 0
      %939 = vmatpush1.bf16.msra.mxu0 0
      %940 = vmatprep.subr.bf16.mxu0 0
      %941 = vmatpush1.bf16.msra.mxu0 0
      %942 = vmatprep.subr.bf16.mxu0 0
      %943 = vmatpush1.bf16.msra.mxu0 0
      %944 = vmatprep.subr.bf16.mxu0 0
      %945 = vmatpush1.bf16.msra.mxu0 0
      %946 = vmatprep.subr.bf16.mxu0 0
      %947 = vmatpush1.bf16.msra.mxu0 0
      %948 = vmatprep.subr.bf16.mxu0 0
      %949 = vmatpush1.bf16.msra.mxu0 0
      %950 = vmatprep.subr.bf16.mxu0 0
      %951 = vmatpush1.bf16.msra.mxu0 0
      %952 = vmatprep.subr.bf16.mxu0 0
      %953 = vmatpush1.bf16.msra.mxu0 0
      %954 = vmatprep.subr.bf16.mxu0 0
      %955 = vmatpush1.bf16.msra.mxu0 0
      %956 = vmatprep.subr.bf16.mxu0 0
      %957 = vmatpush1.bf16.msra.mxu0 0
      %958 = vmatprep.subr.bf16.mxu0 0
      %959 = vmatpush1.bf16.msra.mxu0 0
      %960 = vmatprep.subr.bf16.mxu0 0
      %961 = vmatpush1.bf16.msra.mxu0 0
      %962 = vmatprep.mubr.bf16.mxu0 0
      %963 = vmatmul.mubr.bf16.gmra.mrb[0].mxu0 %v879
      %v964 = vpop.f32.mrb[0].mxu0
      %v965 = vadd.f32 %v671, %v964
      %v966 = vpop.f32.mrb[0].mxu0
      %v967 = vpop.f32.mrb[0].mxu0
      %v968 = vadd.f32 %v674, %v967
      %v969 = vpop.f32.mrb[0].mxu0
      %970 = vmatprep.mubr.bf16.mxu0 0
      %971 = vmatmul.mubr.bf16.gmra.mrb[0].mxu0 %v882
      %v972 = vpop.f32.mrb[0].mxu0
      %v973 = vadd.f32 %v679, %v972
      %v974 = vpop.f32.mrb[0].mxu0
      %v975 = vpop.f32.mrb[0].mxu0
      %v976 = vadd.f32 %v682, %v975
      %v977 = vpop.f32.mrb[0].mxu0
      %978 = vmatprep.mubr.bf16.mxu0 0
      %979 = vmatmul.mubr.bf16.gmra.mrb[0].mxu0 %v885
      %v980 = vpop.f32.mrb[0].mxu0
      %v981 = vadd.f32 %v687, %v980
      %v982 = vpop.f32.mrb[0].mxu0
      %v983 = vpop.f32.mrb[0].mxu0
      %v984 = vadd.f32 %v690, %v983
      %v985 = vpop.f32.mrb[0].mxu0
      %986 = vmatprep.mubr.bf16.mxu0 0
      %987 = vmatmul.mubr.bf16.gmra.mrb[0].mxu0 %v888
      %v988 = vpop.f32.mrb[0].mxu0
      %v989 = vadd.f32 %v695, %v988
      %v990 = vpop.f32.mrb[0].mxu0
      %v991 = vpop.f32.mrb[0].mxu0
      %v992 = vadd.f32 %v698, %v991
      %v993 = vpop.f32.mrb[0].mxu0
      %994 = vmatprep.mubr.bf16.mxu0 0
      %995 = vmatmul.mubr.bf16.gmra.mrb[0].mxu0 %v891
      %v996 = vpop.f32.mrb[0].mxu0
      %v997 = vadd.f32 %v703, %v996
      %v998 = vpop.f32.mrb[0].mxu0
      %v999 = vpop.f32.mrb[0].mxu0
      %v1000 = vadd.f32 %v706, %v999
      %v1001 = vpop.f32.mrb[0].mxu0
      %1002 = vmatprep.mubr.bf16.mxu0 0
      %1003 = vmatmul.mubr.bf16.gmra.mrb[0].mxu0 %v894
      %v1004 = vpop.f32.mrb[0].mxu0
      %v1005 = vadd.f32 %v711, %v1004
      %v1006 = vpop.f32.mrb[0].mxu0
      %v1007 = vpop.f32.mrb[0].mxu0
      %v1008 = vadd.f32 %v714, %v1007
      %v1009 = vpop.f32.mrb[0].mxu0
      %1010 = vmatprep.mubr.bf16.mxu0 0
      %1011 = vmatmul.mubr.bf16.gmra.mrb[0].mxu0 %v897
      %v1012 = vpop.f32.mrb[0].mxu0
      %v1013 = vadd.f32 %v719, %v1012
      %v1014 = vpop.f32.mrb[0].mxu0
      %v1015 = vpop.f32.mrb[0].mxu0
      %v1016 = vadd.f32 %v722, %v1015
      %v1017 = vpop.f32.mrb[0].mxu0
      %1018 = vmatprep.mubr.bf16.mxu0 0
      %1019 = vmatmul.mubr.bf16.gmra.mrb[0].mxu0 %v900
      %v1020 = vpop.f32.mrb[0].mxu0
      %v1021 = vadd.f32 %v727, %v1020
      %v1022 = vpop.f32.mrb[0].mxu0
      %v1023 = vpop.f32.mrb[0].mxu0
      %v1024 = vadd.f32 %v730, %v1023
      %v1025 = vpop.f32.mrb[0].mxu0
      %1026 = vmatprep.mubr.bf16.mxu0 0
      %1027 = vmatmul.mubr.bf16.gmra.mrb[0].mxu0 %v903
      %v1028 = vpop.f32.mrb[0].mxu0
      %v1029 = vadd.f32 %v735, %v1028
      %v1030 = vpop.f32.mrb[0].mxu0
      %v1031 = vpop.f32.mrb[0].mxu0
      %v1032 = vadd.f32 %v738, %v1031
      %v1033 = vpop.f32.mrb[0].mxu0
      %1034 = vmatprep.mubr.bf16.mxu0 0
      %1035 = vmatmul.mubr.bf16.gmra.mrb[0].mxu0 %v906
      %v1036 = vpop.f32.mrb[0].mxu0
      %v1037 = vadd.f32 %v743, %v1036
      %v1038 = vpop.f32.mrb[0].mxu0
      %v1039 = vpop.f32.mrb[0].mxu0
      %v1040 = vadd.f32 %v746, %v1039
      %v1041 = vpop.f32.mrb[0].mxu0
      %1042 = vmatprep.mubr.bf16.mxu0 0
      %1043 = vmatmul.mubr.bf16.gmra.mrb[0].mxu0 %v909
      %v1044 = vpop.f32.mrb[0].mxu0
      %v1045 = vadd.f32 %v751, %v1044
      %v1046 = vpop.f32.mrb[0].mxu0
      %v1047 = vpop.f32.mrb[0].mxu0
      %v1048 = vadd.f32 %v754, %v1047
      %v1049 = vpop.f32.mrb[0].mxu0
      %1050 = vmatprep.mubr.bf16.mxu0 0
      %1051 = vmatmul.mubr.bf16.gmra.mrb[0].mxu0 %v912
      %v1052 = vpop.f32.mrb[0].mxu0
      %v1053 = vadd.f32 %v759, %v1052
      %v1054 = vpop.f32.mrb[0].mxu0
      %v1055 = vpop.f32.mrb[0].mxu0
      %v1056 = vadd.f32 %v762, %v1055
      %v1057 = vpop.f32.mrb[0].mxu0
      %1058 = vmatprep.mubr.bf16.mxu0 0
      %1059 = vmatmul.mubr.bf16.gmra.mrb[0].mxu0 %v915
      %v1060 = vpop.f32.mrb[0].mxu0
      %v1061 = vadd.f32 %v767, %v1060
      %v1062 = vpop.f32.mrb[0].mxu0
      %v1063 = vpop.f32.mrb[0].mxu0
      %v1064 = vadd.f32 %v770, %v1063
      %v1065 = vpop.f32.mrb[0].mxu0
      %1066 = vmatprep.mubr.bf16.mxu0 0
      %1067 = vmatmul.mubr.bf16.gmra.mrb[0].mxu0 %v918
      %v1068 = vpop.f32.mrb[0].mxu0
      %v1069 = vadd.f32 %v775, %v1068
      %v1070 = vpop.f32.mrb[0].mxu0
      %v1071 = vpop.f32.mrb[0].mxu0
      %v1072 = vadd.f32 %v778, %v1071
      %v1073 = vpop.f32.mrb[0].mxu0
      %1074 = vmatprep.mubr.bf16.mxu0 0
      %1075 = vmatmul.mubr.bf16.gmra.mrb[0].mxu0 %v921
      %v1076 = vpop.f32.mrb[0].mxu0
      %v1077 = vadd.f32 %v783, %v1076
      %v1078 = vpop.f32.mrb[0].mxu0
      %v1079 = vpop.f32.mrb[0].mxu0
      %v1080 = vadd.f32 %v786, %v1079
      %v1081 = vpop.f32.mrb[0].mxu0
      %1082 = vmatprep.mubr.bf16.mxu0 0
      %1083 = vmatmul.mubr.bf16.gmra.mrb[0].mxu0 %v924
      %v1084 = vpop.f32.mrb[0].mxu0
      %v1085 = vadd.f32 %v791, %v1084
      %v1086 = vpop.f32.mrb[0].mxu0
      %v1087 = vpop.f32.mrb[0].mxu0
      %v1088 = vadd.f32 %v794, %v1087
      %v1089 = vpop.f32.mrb[0].mxu0
      %1090 = vdwg.mxu0
      %v1091 = vld [vmem:[%s428] sm:$0xf]
      %v1092 = vld [vmem:[%s428 + $0x4] sm:$0xf]
      %v1093 = vld [vmem:[%s428 + $0x8] sm:$0xf]
      %v1094 = vld [vmem:[%s428 + $0xc] sm:$0xf]
      %v1095 = vld [vmem:[%s428 + $0x10] sm:$0xf]
      %v1096 = vld [vmem:[%s428 + $0x14] sm:$0xf]
      %v1097 = vld [vmem:[%s428 + $0x18] sm:$0xf]
      %v1098 = vld [vmem:[%s428 + $0x1c] sm:$0xf]
      %v1099 = vld [vmem:[%s428 + $0x20] sm:$0xf]
      %v1100 = vld [vmem:[%s428 + $0x24] sm:$0xf]
      %v1101 = vld [vmem:[%s428 + $0x28] sm:$0xf]
      %v1102 = vld [vmem:[%s428 + $0x2c] sm:$0xf]
      %v1103 = vld [vmem:[%s428 + $0x30] sm:$0xf]
      %v1104 = vld [vmem:[%s428 + $0x34] sm:$0xf]
      %v1105 = vld [vmem:[%s428 + $0x38] sm:$0xf]
      %v1106 = vld [vmem:[%s428 + $0x3c] sm:$0xf]
      %v1107 = vld [vmem:[%s428 + $0x40] sm:$0xf]
      %v1108 = vld [vmem:[%s428 + $0x44] sm:$0xf]
      %v1109 = vld [vmem:[%s428 + $0x48] sm:$0xf]
      %v1110 = vld [vmem:[%s428 + $0x4c] sm:$0xf]
      %v1111 = vld [vmem:[%s428 + $0x50] sm:$0xf]
      %v1112 = vld [vmem:[%s428 + $0x54] sm:$0xf]
      %v1113 = vld [vmem:[%s428 + $0x58] sm:$0xf]
      %v1114 = vld [vmem:[%s428 + $0x5c] sm:$0xf]
      %v1115 = vld [vmem:[%s428 + $0x60] sm:$0xf]
      %v1116 = vld [vmem:[%s428 + $0x64] sm:$0xf]
      %v1117 = vld [vmem:[%s428 + $0x68] sm:$0xf]
      %v1118 = vld [vmem:[%s428 + $0x6c] sm:$0xf]
      %v1119 = vld [vmem:[%s428 + $0x70] sm:$0xf]
      %v1120 = vld [vmem:[%s428 + $0x74] sm:$0xf]
      %v1121 = vld [vmem:[%s428 + $0x78] sm:$0xf]
      %v1122 = vld [vmem:[%s428 + $0x7c] sm:$0xf]
      %v1123 = vld [vmem:[%s5] sm:$0x3]
      %v1156 = vunpack.c.l.b16 %v1091
      %v1157 = vunpack.c.l.b16 %v1092
      %v1158 = vunpack.c.l.b16 %v1093
      %v1159 = vunpack.c.l.b16 %v1094
      %v1160 = vunpack.c.l.b16 %v1095
      %v1161 = vunpack.c.l.b16 %v1096
      %v1162 = vunpack.c.l.b16 %v1097
      %v1163 = vunpack.c.l.b16 %v1098
      %v1164 = vunpack.c.l.b16 %v1099
      %v1165 = vunpack.c.l.b16 %v1100
      %v1166 = vunpack.c.l.b16 %v1101
      %v1167 = vunpack.c.l.b16 %v1102
      %v1168 = vunpack.c.l.b16 %v1103
      %v1169 = vunpack.c.l.b16 %v1104
      %v1170 = vunpack.c.l.b16 %v1105
      %v1171 = vunpack.c.l.b16 %v1106
      %v1172 = vunpack.c.l.b16 %v1107
      %v1173 = vunpack.c.l.b16 %v1108
      %v1174 = vunpack.c.l.b16 %v1109
      %v1175 = vunpack.c.l.b16 %v1110
      %v1176 = vunpack.c.l.b16 %v1111
      %v1177 = vunpack.c.l.b16 %v1112
      %v1178 = vunpack.c.l.b16 %v1113
      %v1179 = vunpack.c.l.b16 %v1114
      %v1180 = vunpack.c.l.b16 %v1115
      %v1181 = vunpack.c.l.b16 %v1116
      %v1182 = vunpack.c.l.b16 %v1117
      %v1183 = vunpack.c.l.b16 %v1118
      %v1184 = vunpack.c.l.b16 %v1119
      %v1185 = vunpack.c.l.b16 %v1120
      %v1186 = vunpack.c.l.b16 %v1121
      %v1187 = vunpack.c.l.b16 %v1122
      %v1188 = vpack.c.b16 %v1157, %v1156
      %v1189 = vpack.c.b16 %v1159, %v1158
      %v1190 = vpack.c.b16 %v1161, %v1160
      %v1191 = vpack.c.b16 %v1163, %v1162
      %v1192 = vpack.c.b16 %v1165, %v1164
      %v1193 = vpack.c.b16 %v1167, %v1166
      %v1194 = vpack.c.b16 %v1169, %v1168
      %v1195 = vpack.c.b16 %v1171, %v1170
      %v1196 = vpack.c.b16 %v1173, %v1172
      %v1197 = vpack.c.b16 %v1175, %v1174
      %v1198 = vpack.c.b16 %v1177, %v1176
      %v1199 = vpack.c.b16 %v1179, %v1178
      %v1200 = vpack.c.b16 %v1181, %v1180
      %v1201 = vpack.c.b16 %v1183, %v1182
      %v1202 = vpack.c.b16 %v1185, %v1184
      %v1203 = vpack.c.b16 %v1187, %v1186
      %v1205 = vsel %vm583, %v1188, 0
      %v1208 = vsel %vm583, %v1189, 0
      %v1211 = vsel %vm583, %v1190, 0
      %v1214 = vsel %vm583, %v1191, 0
      %v1217 = vsel %vm583, %v1192, 0
      %v1220 = vsel %vm583, %v1193, 0
      %v1223 = vsel %vm583, %v1194, 0
      %v1226 = vsel %vm583, %v1195, 0
      %v1229 = vsel %vm583, %v1196, 0
      %v1232 = vsel %vm583, %v1197, 0
      %v1235 = vsel %vm583, %v1198, 0
      %v1238 = vsel %vm583, %v1199, 0
      %v1241 = vsel %vm583, %v1200, 0
      %v1244 = vsel %vm583, %v1201, 0
      %v1247 = vsel %vm583, %v1202, 0
      %v1250 = vsel %vm583, %v1203, 0
      %v1253 = vsel %vm632, %v1123, 0
      %1255 = vmatprep.subr.bf16.mxu0 0
      %1256 = vmatpush1.bf16.msra.mxu0 %v1253
      %1257 = vmatprep.subr.bf16.mxu0 0
      %1258 = vmatpush1.bf16.msra.mxu0 0
      %1259 = vmatprep.subr.bf16.mxu0 0
      %1260 = vmatpush1.bf16.msra.mxu0 0
      %1261 = vmatprep.subr.bf16.mxu0 0
      %1262 = vmatpush1.bf16.msra.mxu0 0
      %1263 = vmatprep.subr.bf16.mxu0 0
      %1264 = vmatpush1.bf16.msra.mxu0 0
      %1265 = vmatprep.subr.bf16.mxu0 0
      %1266 = vmatpush1.bf16.msra.mxu0 0
      %1267 = vmatprep.subr.bf16.mxu0 0
      %1268 = vmatpush1.bf16.msra.mxu0 0
      %1269 = vmatprep.subr.bf16.mxu0 0
      %1270 = vmatpush1.bf16.msra.mxu0 0
      %1271 = vmatprep.subr.bf16.mxu0 0
      %1272 = vmatpush1.bf16.msra.mxu0 0
      %1273 = vmatprep.subr.bf16.mxu0 0
      %1274 = vmatpush1.bf16.msra.mxu0 0
      %1275 = vmatprep.subr.bf16.mxu0 0
      %1276 = vmatpush1.bf16.msra.mxu0 0
      %1277 = vmatprep.subr.bf16.mxu0 0
      %1278 = vmatpush1.bf16.msra.mxu0 0
      %1279 = vmatprep.subr.bf16.mxu0 0
      %1280 = vmatpush1.bf16.msra.mxu0 0
      %1281 = vmatprep.subr.bf16.mxu0 0
      %1282 = vmatpush1.bf16.msra.mxu0 0
      %1283 = vmatprep.subr.bf16.mxu0 0
      %1284 = vmatpush1.bf16.msra.mxu0 0
      %1285 = vmatprep.subr.bf16.mxu0 0
      %1286 = vmatpush1.bf16.msra.mxu0 0
      %1287 = vmatprep.mubr.bf16.mxu0 0
      %1288 = vmatmul.mubr.bf16.gmra.mrb[0].mxu0 %v1205
      %v1289 = vpop.f32.mrb[0].mxu0
      %v1290 = vadd.f32 0.0, %v1289
      %v1291 = vpop.f32.mrb[0].mxu0
      %v1292 = vpop.f32.mrb[0].mxu0
      %v1293 = vadd.f32 0.0, %v1292
      %v1294 = vpop.f32.mrb[0].mxu0
      %1295 = vmatprep.mubr.bf16.mxu0 0
      %1296 = vmatmul.mubr.bf16.gmra.mrb[0].mxu0 %v1208
      %v1297 = vpop.f32.mrb[0].mxu0
      %v1298 = vadd.f32 0.0, %v1297
      %v1299 = vpop.f32.mrb[0].mxu0
      %v1300 = vpop.f32.mrb[0].mxu0
      %v1301 = vadd.f32 0.0, %v1300
      %v1302 = vpop.f32.mrb[0].mxu0
      %1303 = vmatprep.mubr.bf16.mxu0 0
      %1304 = vmatmul.mubr.bf16.gmra.mrb[0].mxu0 %v1211
      %v1305 = vpop.f32.mrb[0].mxu0
      %v1306 = vadd.f32 0.0, %v1305
      %v1307 = vpop.f32.mrb[0].mxu0
      %v1308 = vpop.f32.mrb[0].mxu0
      %v1309 = vadd.f32 0.0, %v1308
      %v1310 = vpop.f32.mrb[0].mxu0
      %1311 = vmatprep.mubr.bf16.mxu0 0
      %1312 = vmatmul.mubr.bf16.gmra.mrb[0].mxu0 %v1214
      %v1313 = vpop.f32.mrb[0].mxu0
      %v1314 = vadd.f32 0.0, %v1313
      %v1315 = vpop.f32.mrb[0].mxu0
      %v1316 = vpop.f32.mrb[0].mxu0
      %v1317 = vadd.f32 0.0, %v1316
      %v1318 = vpop.f32.mrb[0].mxu0
      %1319 = vmatprep.mubr.bf16.mxu0 0
      %1320 = vmatmul.mubr.bf16.gmra.mrb[0].mxu0 %v1217
      %v1321 = vpop.f32.mrb[0].mxu0
      %v1322 = vadd.f32 0.0, %v1321
      %v1323 = vpop.f32.mrb[0].mxu0
      %v1324 = vpop.f32.mrb[0].mxu0
      %v1325 = vadd.f32 0.0, %v1324
      %v1326 = vpop.f32.mrb[0].mxu0
      %1327 = vmatprep.mubr.bf16.mxu0 0
      %1328 = vmatmul.mubr.bf16.gmra.mrb[0].mxu0 %v1220
      %v1329 = vpop.f32.mrb[0].mxu0
      %v1330 = vadd.f32 0.0, %v1329
      %v1331 = vpop.f32.mrb[0].mxu0
      %v1332 = vpop.f32.mrb[0].mxu0
      %v1333 = vadd.f32 0.0, %v1332
      %v1334 = vpop.f32.mrb[0].mxu0
      %1335 = vmatprep.mubr.bf16.mxu0 0
      %1336 = vmatmul.mubr.bf16.gmra.mrb[0].mxu0 %v1223
      %v1337 = vpop.f32.mrb[0].mxu0
      %v1338 = vadd.f32 0.0, %v1337
      %v1339 = vpop.f32.mrb[0].mxu0
      %v1340 = vpop.f32.mrb[0].mxu0
      %v1341 = vadd.f32 0.0, %v1340
      %v1342 = vpop.f32.mrb[0].mxu0
      %1343 = vmatprep.mubr.bf16.mxu0 0
      %1344 = vmatmul.mubr.bf16.gmra.mrb[0].mxu0 %v1226
      %v1345 = vpop.f32.mrb[0].mxu0
      %v1346 = vadd.f32 0.0, %v1345
      %v1347 = vpop.f32.mrb[0].mxu0
      %v1348 = vpop.f32.mrb[0].mxu0
      %v1349 = vadd.f32 0.0, %v1348
      %v1350 = vpop.f32.mrb[0].mxu0
      %1351 = vmatprep.mubr.bf16.mxu0 0
      %1352 = vmatmul.mubr.bf16.gmra.mrb[0].mxu0 %v1229
      %v1353 = vpop.f32.mrb[0].mxu0
      %v1354 = vadd.f32 0.0, %v1353
      %v1355 = vpop.f32.mrb[0].mxu0
      %v1356 = vpop.f32.mrb[0].mxu0
      %v1357 = vadd.f32 0.0, %v1356
      %v1358 = vpop.f32.mrb[0].mxu0
      %1359 = vmatprep.mubr.bf16.mxu0 0
      %1360 = vmatmul.mubr.bf16.gmra.mrb[0].mxu0 %v1232
      %v1361 = vpop.f32.mrb[0].mxu0
      %v1362 = vadd.f32 0.0, %v1361
      %v1363 = vpop.f32.mrb[0].mxu0
      %v1364 = vpop.f32.mrb[0].mxu0
      %v1365 = vadd.f32 0.0, %v1364
      %v1366 = vpop.f32.mrb[0].mxu0
      %1367 = vmatprep.mubr.bf16.mxu0 0
      %1368 = vmatmul.mubr.bf16.gmra.mrb[0].mxu0 %v1235
      %v1369 = vpop.f32.mrb[0].mxu0
      %v1370 = vadd.f32 0.0, %v1369
      %v1371 = vpop.f32.mrb[0].mxu0
      %v1372 = vpop.f32.mrb[0].mxu0
      %v1373 = vadd.f32 0.0, %v1372
      %v1374 = vpop.f32.mrb[0].mxu0
      %1375 = vmatprep.mubr.bf16.mxu0 0
      %1376 = vmatmul.mubr.bf16.gmra.mrb[0].mxu0 %v1238
      %v1377 = vpop.f32.mrb[0].mxu0
      %v1378 = vadd.f32 0.0, %v1377
      %v1379 = vpop.f32.mrb[0].mxu0
      %v1380 = vpop.f32.mrb[0].mxu0
      %v1381 = vadd.f32 0.0, %v1380
      %v1382 = vpop.f32.mrb[0].mxu0
      %1383 = vmatprep.mubr.bf16.mxu0 0
      %1384 = vmatmul.mubr.bf16.gmra.mrb[0].mxu0 %v1241
      %v1385 = vpop.f32.mrb[0].mxu0
      %v1386 = vadd.f32 0.0, %v1385
      %v1387 = vpop.f32.mrb[0].mxu0
      %v1388 = vpop.f32.mrb[0].mxu0
      %v1389 = vadd.f32 0.0, %v1388
      %v1390 = vpop.f32.mrb[0].mxu0
      %1391 = vmatprep.mubr.bf16.mxu0 0
      %1392 = vmatmul.mubr.bf16.gmra.mrb[0].mxu0 %v1244
      %v1393 = vpop.f32.mrb[0].mxu0
      %v1394 = vadd.f32 0.0, %v1393
      %v1395 = vpop.f32.mrb[0].mxu0
      %v1396 = vpop.f32.mrb[0].mxu0
      %v1397 = vadd.f32 0.0, %v1396
      %v1398 = vpop.f32.mrb[0].mxu0
      %1399 = vmatprep.mubr.bf16.mxu0 0
      %1400 = vmatmul.mubr.bf16.gmra.mrb[0].mxu0 %v1247
      %v1401 = vpop.f32.mrb[0].mxu0
      %v1402 = vadd.f32 0.0, %v1401
      %v1403 = vpop.f32.mrb[0].mxu0
      %v1404 = vpop.f32.mrb[0].mxu0
      %v1405 = vadd.f32 0.0, %v1404
      %v1406 = vpop.f32.mrb[0].mxu0
      %1407 = vmatprep.mubr.bf16.mxu0 0
      %1408 = vmatmul.mubr.bf16.gmra.mrb[0].mxu0 %v1250
      %v1409 = vpop.f32.mrb[0].mxu0
      %v1410 = vadd.f32 0.0, %v1409
      %v1411 = vpop.f32.mrb[0].mxu0
      %v1412 = vpop.f32.mrb[0].mxu0
      %v1413 = vadd.f32 0.0, %v1412
      %v1414 = vpop.f32.mrb[0].mxu0
      %1415 = vdwg.mxu0
      %v1416 = vadd.f32 %v965, %v1290
      %v1417 = vadd.f32 %v968, %v1293
      %v1418 = vadd.f32 %v973, %v1298
      %v1419 = vadd.f32 %v976, %v1301
      %v1420 = vadd.f32 %v981, %v1306
      %v1421 = vadd.f32 %v984, %v1309
      %v1422 = vadd.f32 %v989, %v1314
      %v1423 = vadd.f32 %v992, %v1317
      %v1424 = vadd.f32 %v997, %v1322
      %v1425 = vadd.f32 %v1000, %v1325
      %v1426 = vadd.f32 %v1005, %v1330
      %v1427 = vadd.f32 %v1008, %v1333
      %v1428 = vadd.f32 %v1013, %v1338
      %v1429 = vadd.f32 %v1016, %v1341
      %v1430 = vadd.f32 %v1021, %v1346
      %v1431 = vadd.f32 %v1024, %v1349
      %v1432 = vadd.f32 %v1029, %v1354
      %v1433 = vadd.f32 %v1032, %v1357
      %v1434 = vadd.f32 %v1037, %v1362
      %v1435 = vadd.f32 %v1040, %v1365
      %v1436 = vadd.f32 %v1045, %v1370
      %v1437 = vadd.f32 %v1048, %v1373
      %v1438 = vadd.f32 %v1053, %v1378
      %v1439 = vadd.f32 %v1056, %v1381
      %v1440 = vadd.f32 %v1061, %v1386
      %v1441 = vadd.f32 %v1064, %v1389
      %v1442 = vadd.f32 %v1069, %v1394
      %v1443 = vadd.f32 %v1072, %v1397
      %v1444 = vadd.f32 %v1077, %v1402
      %v1445 = vadd.f32 %v1080, %v1405
      %v1446 = vadd.f32 %v1085, %v1410
      %v1447 = vadd.f32 %v1088, %v1413
      %v1448 = vld [vmem:[%s6] sm:$0x1]
      %v1450 = vlaneseq
      %v1451 = vshrl.u32 %v1450, 7
      %v1452 = vsub.s32 0, %v1451
      %v1453 = vrot.slane %v1448, %v1452
      %v1455 = vadd.f32 %v1416, %v1453
      %v1456 = vadd.f32 %v1417, %v1453
      %v1457 = vadd.f32 %v1418, %v1453
      %v1458 = vadd.f32 %v1419, %v1453
      %v1459 = vadd.f32 %v1420, %v1453
      %v1460 = vadd.f32 %v1421, %v1453
      %v1461 = vadd.f32 %v1422, %v1453
      %v1462 = vadd.f32 %v1423, %v1453
      %v1463 = vadd.f32 %v1424, %v1453
      %v1464 = vadd.f32 %v1425, %v1453
      %v1465 = vadd.f32 %v1426, %v1453
      %v1466 = vadd.f32 %v1427, %v1453
      %v1467 = vadd.f32 %v1428, %v1453
      %v1468 = vadd.f32 %v1429, %v1453
      %v1469 = vadd.f32 %v1430, %v1453
      %v1470 = vadd.f32 %v1431, %v1453
      %v1471 = vadd.f32 %v1432, %v1453
      %v1472 = vadd.f32 %v1433, %v1453
      %v1473 = vadd.f32 %v1434, %v1453
      %v1474 = vadd.f32 %v1435, %v1453
      %v1475 = vadd.f32 %v1436, %v1453
      %v1476 = vadd.f32 %v1437, %v1453
      %v1477 = vadd.f32 %v1438, %v1453
      %v1478 = vadd.f32 %v1439, %v1453
      %v1479 = vadd.f32 %v1440, %v1453
      %v1480 = vadd.f32 %v1441, %v1453
      %v1481 = vadd.f32 %v1442, %v1453
      %v1482 = vadd.f32 %v1443, %v1453
      %v1483 = vadd.f32 %v1444, %v1453
      %v1484 = vadd.f32 %v1445, %v1453
      %v1485 = vadd.f32 %v1446, %v1453
      %v1486 = vadd.f32 %v1447, %v1453
      %v1487 = vmax.f32 %v1455, 0.0
      %v1488 = vmax.f32 %v1456, 0.0
      %v1489 = vmax.f32 %v1457, 0.0
      %v1490 = vmax.f32 %v1458, 0.0
      %v1491 = vmax.f32 %v1459, 0.0
      %v1492 = vmax.f32 %v1460, 0.0
      %v1493 = vmax.f32 %v1461, 0.0
      %v1494 = vmax.f32 %v1462, 0.0
      %v1495 = vmax.f32 %v1463, 0.0
      %v1496 = vmax.f32 %v1464, 0.0
      %v1497 = vmax.f32 %v1465, 0.0
      %v1498 = vmax.f32 %v1466, 0.0
      %v1499 = vmax.f32 %v1467, 0.0
      %v1500 = vmax.f32 %v1468, 0.0
      %v1501 = vmax.f32 %v1469, 0.0
      %v1502 = vmax.f32 %v1470, 0.0
      %v1503 = vmax.f32 %v1471, 0.0
      %v1504 = vmax.f32 %v1472, 0.0
      %v1505 = vmax.f32 %v1473, 0.0
      %v1506 = vmax.f32 %v1474, 0.0
      %v1507 = vmax.f32 %v1475, 0.0
      %v1508 = vmax.f32 %v1476, 0.0
      %v1509 = vmax.f32 %v1477, 0.0
      %v1510 = vmax.f32 %v1478, 0.0
      %v1511 = vmax.f32 %v1479, 0.0
      %v1512 = vmax.f32 %v1480, 0.0
      %v1513 = vmax.f32 %v1481, 0.0
      %v1514 = vmax.f32 %v1482, 0.0
      %v1515 = vmax.f32 %v1483, 0.0
      %v1516 = vmax.f32 %v1484, 0.0
      %v1517 = vmax.f32 %v1485, 0.0
      %v1518 = vmax.f32 %v1486, 0.0
      %v1519 = vpack.c.bf16 %v1488, %v1487
      %v1520 = vpack.c.bf16 %v1490, %v1489
      %v1521 = vpack.c.bf16 %v1492, %v1491
      %v1522 = vpack.c.bf16 %v1494, %v1493
      %v1523 = vpack.c.bf16 %v1496, %v1495
      %v1524 = vpack.c.bf16 %v1498, %v1497
      %v1525 = vpack.c.bf16 %v1500, %v1499
      %v1526 = vpack.c.bf16 %v1502, %v1501
      %v1527 = vpack.c.bf16 %v1504, %v1503
      %v1528 = vpack.c.bf16 %v1506, %v1505
      %v1529 = vpack.c.bf16 %v1508, %v1507
      %v1530 = vpack.c.bf16 %v1510, %v1509
      %v1531 = vpack.c.bf16 %v1512, %v1511
      %v1532 = vpack.c.bf16 %v1514, %v1513
      %v1533 = vpack.c.bf16 %v1516, %v1515
      %v1534 = vpack.c.bf16 %v1518, %v1517
      %v1535 = vld [vmem:[%s7] sm:$0xf]
      %v1536 = vld [vmem:[%s7 + $0x4] sm:$0xf]
      %v1537 = vld [vmem:[%s7 + $0x8] sm:$0xf]
      %v1538 = vld [vmem:[%s7 + $0xc] sm:$0xf]
      %v1539 = vld [vmem:[%s8] sm:$0x1]
      %v1541 = vlaneseq
      %v1542 = vshrl.u32 %v1541, 7
      %v1543 = vsub.s32 0, %v1542
      %v1544 = vrot.slane %v1539, %v1543
      %v1550 = vunpack.c.l.b16 %v1535
      %v1551 = vunpack.c.l.b16 %v1536
      %v1552 = vunpack.c.l.b16 %v1537
      %v1553 = vunpack.c.l.b16 %v1538
      %v1554 = vpack.c.b16 %v1551, %v1550
      %v1555 = vpack.c.b16 %v1553, %v1552
      %vm1558 = vcmask 261120
      %v1560 = vsel %vm1558, %v1519, 0
      %v1563 = vsel %vm1558, %v1520, 0
      %v1566 = vsel %vm1558, %v1521, 0
      %v1569 = vsel %vm1558, %v1522, 0
      %v1572 = vsel %vm1558, %v1523, 0
      %v1575 = vsel %vm1558, %v1524, 0
      %v1578 = vsel %vm1558, %v1525, 0
      %v1581 = vsel %vm1558, %v1526, 0
      %v1584 = vsel %vm1558, %v1527, 0
      %v1587 = vsel %vm1558, %v1528, 0
      %v1590 = vsel %vm1558, %v1529, 0
      %v1593 = vsel %vm1558, %v1530, 0
      %v1596 = vsel %vm1558, %v1531, 0
      %v1599 = vsel %vm1558, %v1532, 0
      %v1602 = vsel %vm1558, %v1533, 0
      %v1605 = vsel %vm1558, %v1534, 0
      %1607 = vmatprep.subr.bf16.mxu0 0
      %1608 = vmatpush1.bf16.msra.mxu0 %v1554
      %1609 = vmatprep.subr.bf16.mxu0 0
      %1610 = vmatpush1.bf16.msra.mxu0 %v1555
      %1611 = vmatprep.subr.bf16.mxu0 0
      %1612 = vmatpush1.bf16.msra.mxu0 0
      %1613 = vmatprep.subr.bf16.mxu0 0
      %1614 = vmatpush1.bf16.msra.mxu0 0
      %1615 = vmatprep.subr.bf16.mxu0 0
      %1616 = vmatpush1.bf16.msra.mxu0 0
      %1617 = vmatprep.subr.bf16.mxu0 0
      %1618 = vmatpush1.bf16.msra.mxu0 0
      %1619 = vmatprep.subr.bf16.mxu0 0
      %1620 = vmatpush1.bf16.msra.mxu0 0
      %1621 = vmatprep.subr.bf16.mxu0 0
      %1622 = vmatpush1.bf16.msra.mxu0 0
      %1623 = vmatprep.subr.bf16.mxu0 0
      %1624 = vmatpush1.bf16.msra.mxu0 0
      %1625 = vmatprep.subr.bf16.mxu0 0
      %1626 = vmatpush1.bf16.msra.mxu0 0
      %1627 = vmatprep.subr.bf16.mxu0 0
      %1628 = vmatpush1.bf16.msra.mxu0 0
      %1629 = vmatprep.subr.bf16.mxu0 0
      %1630 = vmatpush1.bf16.msra.mxu0 0
      %1631 = vmatprep.subr.bf16.mxu0 0
      %1632 = vmatpush1.bf16.msra.mxu0 0
      %1633 = vmatprep.subr.bf16.mxu0 0
      %1634 = vmatpush1.bf16.msra.mxu0 0
      %1635 = vmatprep.subr.bf16.mxu0 0
      %1636 = vmatpush1.bf16.msra.mxu0 0
      %1637 = vmatprep.subr.bf16.mxu0 0
      %1638 = vmatpush1.bf16.msra.mxu0 0
      %1639 = vmatprep.mubr.bf16.mxu0 0
      %1640 = vmatmul.mubr.bf16.gmra.mrb[0].mxu0 %v1560
      %v1641 = vpop.f32.mrb[0].mxu0
      %v1642 = vadd.f32 %v1544, %v1641
      %v1643 = vpop.f32.mrb[0].mxu0
      %v1644 = vpop.f32.mrb[0].mxu0
      %v1645 = vadd.f32 %v1544, %v1644
      %v1646 = vpop.f32.mrb[0].mxu0
      %1647 = vmatprep.mubr.bf16.mxu0 0
      %1648 = vmatmul.mubr.bf16.gmra.mrb[0].mxu0 %v1563
      %v1649 = vpop.f32.mrb[0].mxu0
      %v1650 = vadd.f32 %v1544, %v1649
      %v1651 = vpop.f32.mrb[0].mxu0
      %v1652 = vpop.f32.mrb[0].mxu0
      %v1653 = vadd.f32 %v1544, %v1652
      %v1654 = vpop.f32.mrb[0].mxu0
      %1655 = vmatprep.mubr.bf16.mxu0 0
      %1656 = vmatmul.mubr.bf16.gmra.mrb[0].mxu0 %v1566
      %v1657 = vpop.f32.mrb[0].mxu0
      %v1658 = vadd.f32 %v1544, %v1657
      %v1659 = vpop.f32.mrb[0].mxu0
      %v1660 = vpop.f32.mrb[0].mxu0
      %v1661 = vadd.f32 %v1544, %v1660
      %v1662 = vpop.f32.mrb[0].mxu0
      %1663 = vmatprep.mubr.bf16.mxu0 0
      %1664 = vmatmul.mubr.bf16.gmra.mrb[0].mxu0 %v1569
      %v1665 = vpop.f32.mrb[0].mxu0
      %v1666 = vadd.f32 %v1544, %v1665
      %v1667 = vpop.f32.mrb[0].mxu0
      %v1668 = vpop.f32.mrb[0].mxu0
      %v1669 = vadd.f32 %v1544, %v1668
      %v1670 = vpop.f32.mrb[0].mxu0
      %1671 = vmatprep.mubr.bf16.mxu0 0
      %1672 = vmatmul.mubr.bf16.gmra.mrb[0].mxu0 %v1572
      %v1673 = vpop.f32.mrb[0].mxu0
      %v1674 = vadd.f32 %v1544, %v1673
      %v1675 = vpop.f32.mrb[0].mxu0
      %v1676 = vpop.f32.mrb[0].mxu0
      %v1677 = vadd.f32 %v1544, %v1676
      %v1678 = vpop.f32.mrb[0].mxu0
      %1679 = vmatprep.mubr.bf16.mxu0 0
      %1680 = vmatmul.mubr.bf16.gmra.mrb[0].mxu0 %v1575
      %v1681 = vpop.f32.mrb[0].mxu0
      %v1682 = vadd.f32 %v1544, %v1681
      %v1683 = vpop.f32.mrb[0].mxu0
      %v1684 = vpop.f32.mrb[0].mxu0
      %v1685 = vadd.f32 %v1544, %v1684
      %v1686 = vpop.f32.mrb[0].mxu0
      %1687 = vmatprep.mubr.bf16.mxu0 0
      %1688 = vmatmul.mubr.bf16.gmra.mrb[0].mxu0 %v1578
      %v1689 = vpop.f32.mrb[0].mxu0
      %v1690 = vadd.f32 %v1544, %v1689
      %v1691 = vpop.f32.mrb[0].mxu0
      %v1692 = vpop.f32.mrb[0].mxu0
      %v1693 = vadd.f32 %v1544, %v1692
      %v1694 = vpop.f32.mrb[0].mxu0
      %1695 = vmatprep.mubr.bf16.mxu0 0
      %1696 = vmatmul.mubr.bf16.gmra.mrb[0].mxu0 %v1581
      %v1697 = vpop.f32.mrb[0].mxu0
      %v1698 = vadd.f32 %v1544, %v1697
      %v1699 = vpop.f32.mrb[0].mxu0
      %v1700 = vpop.f32.mrb[0].mxu0
      %v1701 = vadd.f32 %v1544, %v1700
      %v1702 = vpop.f32.mrb[0].mxu0
      %1703 = vmatprep.mubr.bf16.mxu0 0
      %1704 = vmatmul.mubr.bf16.gmra.mrb[0].mxu0 %v1584
      %v1705 = vpop.f32.mrb[0].mxu0
      %v1706 = vadd.f32 %v1544, %v1705
      %v1707 = vpop.f32.mrb[0].mxu0
      %v1708 = vpop.f32.mrb[0].mxu0
      %v1709 = vadd.f32 %v1544, %v1708
      %v1710 = vpop.f32.mrb[0].mxu0
      %1711 = vmatprep.mubr.bf16.mxu0 0
      %1712 = vmatmul.mubr.bf16.gmra.mrb[0].mxu0 %v1587
      %v1713 = vpop.f32.mrb[0].mxu0
      %v1714 = vadd.f32 %v1544, %v1713
      %v1715 = vpop.f32.mrb[0].mxu0
      %v1716 = vpop.f32.mrb[0].mxu0
      %v1717 = vadd.f32 %v1544, %v1716
      %v1718 = vpop.f32.mrb[0].mxu0
      %1719 = vmatprep.mubr.bf16.mxu0 0
      %1720 = vmatmul.mubr.bf16.gmra.mrb[0].mxu0 %v1590
      %v1721 = vpop.f32.mrb[0].mxu0
      %v1722 = vadd.f32 %v1544, %v1721
      %v1723 = vpop.f32.mrb[0].mxu0
      %v1724 = vpop.f32.mrb[0].mxu0
      %v1725 = vadd.f32 %v1544, %v1724
      %v1726 = vpop.f32.mrb[0].mxu0
      %1727 = vmatprep.mubr.bf16.mxu0 0
      %1728 = vmatmul.mubr.bf16.gmra.mrb[0].mxu0 %v1593
      %v1729 = vpop.f32.mrb[0].mxu0
      %v1730 = vadd.f32 %v1544, %v1729
      %v1731 = vpop.f32.mrb[0].mxu0
      %v1732 = vpop.f32.mrb[0].mxu0
      %v1733 = vadd.f32 %v1544, %v1732
      %v1734 = vpop.f32.mrb[0].mxu0
      %1735 = vmatprep.mubr.bf16.mxu0 0
      %1736 = vmatmul.mubr.bf16.gmra.mrb[0].mxu0 %v1596
      %v1737 = vpop.f32.mrb[0].mxu0
      %v1738 = vadd.f32 %v1544, %v1737
      %v1739 = vpop.f32.mrb[0].mxu0
      %v1740 = vpop.f32.mrb[0].mxu0
      %v1741 = vadd.f32 %v1544, %v1740
      %v1742 = vpop.f32.mrb[0].mxu0
      %1743 = vmatprep.mubr.bf16.mxu0 0
      %1744 = vmatmul.mubr.bf16.gmra.mrb[0].mxu0 %v1599
      %v1745 = vpop.f32.mrb[0].mxu0
      %v1746 = vadd.f32 %v1544, %v1745
      %v1747 = vpop.f32.mrb[0].mxu0
      %v1748 = vpop.f32.mrb[0].mxu0
      %v1749 = vadd.f32 %v1544, %v1748
      %v1750 = vpop.f32.mrb[0].mxu0
      %1751 = vmatprep.mubr.bf16.mxu0 0
      %1752 = vmatmul.mubr.bf16.gmra.mrb[0].mxu0 %v1602
      %v1753 = vpop.f32.mrb[0].mxu0
      %v1754 = vadd.f32 %v1544, %v1753
      %v1755 = vpop.f32.mrb[0].mxu0
      %v1756 = vpop.f32.mrb[0].mxu0
      %v1757 = vadd.f32 %v1544, %v1756
      %v1758 = vpop.f32.mrb[0].mxu0
      %1759 = vmatprep.mubr.bf16.mxu0 0
      %1760 = vmatmul.mubr.bf16.gmra.mrb[0].mxu0 %v1605
      %v1761 = vpop.f32.mrb[0].mxu0
      %v1762 = vadd.f32 %v1544, %v1761
      %v1763 = vpop.f32.mrb[0].mxu0
      %v1764 = vpop.f32.mrb[0].mxu0
      %v1765 = vadd.f32 %v1544, %v1764
      %v1766 = vpop.f32.mrb[0].mxu0
      %1767 = vdwg.mxu0
      %v1768 = vmax.f32 %v1642, 0.0
      %v1769 = vmax.f32 %v1645, 0.0
      %v1770 = vmax.f32 %v1650, 0.0
      %v1771 = vmax.f32 %v1653, 0.0
      %v1772 = vmax.f32 %v1658, 0.0
      %v1773 = vmax.f32 %v1661, 0.0
      %v1774 = vmax.f32 %v1666, 0.0
      %v1775 = vmax.f32 %v1669, 0.0
      %v1776 = vmax.f32 %v1674, 0.0
      %v1777 = vmax.f32 %v1677, 0.0
      %v1778 = vmax.f32 %v1682, 0.0
      %v1779 = vmax.f32 %v1685, 0.0
      %v1780 = vmax.f32 %v1690, 0.0
      %v1781 = vmax.f32 %v1693, 0.0
      %v1782 = vmax.f32 %v1698, 0.0
      %v1783 = vmax.f32 %v1701, 0.0
      %v1784 = vmax.f32 %v1706, 0.0
      %v1785 = vmax.f32 %v1709, 0.0
      %v1786 = vmax.f32 %v1714, 0.0
      %v1787 = vmax.f32 %v1717, 0.0
      %v1788 = vmax.f32 %v1722, 0.0
      %v1789 = vmax.f32 %v1725, 0.0
      %v1790 = vmax.f32 %v1730, 0.0
      %v1791 = vmax.f32 %v1733, 0.0
      %v1792 = vmax.f32 %v1738, 0.0
      %v1793 = vmax.f32 %v1741, 0.0
      %v1794 = vmax.f32 %v1746, 0.0
      %v1795 = vmax.f32 %v1749, 0.0
      %v1796 = vmax.f32 %v1754, 0.0
      %v1797 = vmax.f32 %v1757, 0.0
      %v1798 = vmax.f32 %v1762, 0.0
      %v1799 = vmax.f32 %v1765, 0.0
      %v1800 = vld [vmem:[%s9] sm:$0x1]
      %v1802 = vlaneseq
      %v1803 = vshrl.u32 %v1802, 7
      %v1804 = vsub.s32 0, %v1803
      %v1805 = vrot.slane %v1800, %v1804
      %v1807 = vmul.f32 %v1768, %v1805
      %v1808 = vmul.f32 %v1769, %v1805
      %v1809 = vmul.f32 %v1770, %v1805
      %v1810 = vmul.f32 %v1771, %v1805
      %v1811 = vmul.f32 %v1772, %v1805
      %v1812 = vmul.f32 %v1773, %v1805
      %v1813 = vmul.f32 %v1774, %v1805
      %v1814 = vmul.f32 %v1775, %v1805
      %v1815 = vmul.f32 %v1776, %v1805
      %v1816 = vmul.f32 %v1777, %v1805
      %v1817 = vmul.f32 %v1778, %v1805
      %v1818 = vmul.f32 %v1779, %v1805
      %v1819 = vmul.f32 %v1780, %v1805
      %v1820 = vmul.f32 %v1781, %v1805
      %v1821 = vmul.f32 %v1782, %v1805
      %v1822 = vmul.f32 %v1783, %v1805
      %v1823 = vmul.f32 %v1784, %v1805
      %v1824 = vmul.f32 %v1785, %v1805
      %v1825 = vmul.f32 %v1786, %v1805
      %v1826 = vmul.f32 %v1787, %v1805
      %v1827 = vmul.f32 %v1788, %v1805
      %v1828 = vmul.f32 %v1789, %v1805
      %v1829 = vmul.f32 %v1790, %v1805
      %v1830 = vmul.f32 %v1791, %v1805
      %v1831 = vmul.f32 %v1792, %v1805
      %v1832 = vmul.f32 %v1793, %v1805
      %v1833 = vmul.f32 %v1794, %v1805
      %v1834 = vmul.f32 %v1795, %v1805
      %v1835 = vmul.f32 %v1796, %v1805
      %v1836 = vmul.f32 %v1797, %v1805
      %v1837 = vmul.f32 %v1798, %v1805
      %v1838 = vmul.f32 %v1799, %v1805
      %v1839 = vsel %vm1558, %v1807, 0.0
      %1840 = vadd.xlane.f32.xlu0 %v1839
      %v1841 = vpop.xlane.xlu0 %1840
      %v1842 = vsel %vm1558, %v1808, 0.0
      %1843 = vadd.xlane.f32.xlu0 %v1842
      %v1844 = vpop.xlane.xlu0 %1843
      %v1845 = vsel %vm1558, %v1809, 0.0
      %1846 = vadd.xlane.f32.xlu0 %v1845
      %v1847 = vpop.xlane.xlu0 %1846
      %v1848 = vsel %vm1558, %v1810, 0.0
      %1849 = vadd.xlane.f32.xlu0 %v1848
      %v1850 = vpop.xlane.xlu0 %1849
      %v1851 = vsel %vm1558, %v1811, 0.0
      %1852 = vadd.xlane.f32.xlu0 %v1851
      %v1853 = vpop.xlane.xlu0 %1852
      %v1854 = vsel %vm1558, %v1812, 0.0
      %1855 = vadd.xlane.f32.xlu0 %v1854
      %v1856 = vpop.xlane.xlu0 %1855
      %v1857 = vsel %vm1558, %v1813, 0.0
      %1858 = vadd.xlane.f32.xlu0 %v1857
      %v1859 = vpop.xlane.xlu0 %1858
      %v1860 = vsel %vm1558, %v1814, 0.0
      %1861 = vadd.xlane.f32.xlu0 %v1860
      %v1862 = vpop.xlane.xlu0 %1861
      %v1863 = vsel %vm1558, %v1815, 0.0
      %1864 = vadd.xlane.f32.xlu0 %v1863
      %v1865 = vpop.xlane.xlu0 %1864
      %v1866 = vsel %vm1558, %v1816, 0.0
      %1867 = vadd.xlane.f32.xlu0 %v1866
      %v1868 = vpop.xlane.xlu0 %1867
      %v1869 = vsel %vm1558, %v1817, 0.0
      %1870 = vadd.xlane.f32.xlu0 %v1869
      %v1871 = vpop.xlane.xlu0 %1870
      %v1872 = vsel %vm1558, %v1818, 0.0
      %1873 = vadd.xlane.f32.xlu0 %v1872
      %v1874 = vpop.xlane.xlu0 %1873
      %v1875 = vsel %vm1558, %v1819, 0.0
      %1876 = vadd.xlane.f32.xlu0 %v1875
      %v1877 = vpop.xlane.xlu0 %1876
      %v1878 = vsel %vm1558, %v1820, 0.0
      %1879 = vadd.xlane.f32.xlu0 %v1878
      %v1880 = vpop.xlane.xlu0 %1879
      %v1881 = vsel %vm1558, %v1821, 0.0
      %1882 = vadd.xlane.f32.xlu0 %v1881
      %v1883 = vpop.xlane.xlu0 %1882
      %v1884 = vsel %vm1558, %v1822, 0.0
      %1885 = vadd.xlane.f32.xlu0 %v1884
      %v1886 = vpop.xlane.xlu0 %1885
      %v1887 = vsel %vm1558, %v1823, 0.0
      %1888 = vadd.xlane.f32.xlu0 %v1887
      %v1889 = vpop.xlane.xlu0 %1888
      %v1890 = vsel %vm1558, %v1824, 0.0
      %1891 = vadd.xlane.f32.xlu0 %v1890
      %v1892 = vpop.xlane.xlu0 %1891
      %v1893 = vsel %vm1558, %v1825, 0.0
      %1894 = vadd.xlane.f32.xlu0 %v1893
      %v1895 = vpop.xlane.xlu0 %1894
      %v1896 = vsel %vm1558, %v1826, 0.0
      %1897 = vadd.xlane.f32.xlu0 %v1896
      %v1898 = vpop.xlane.xlu0 %1897
      %v1899 = vsel %vm1558, %v1827, 0.0
      %1900 = vadd.xlane.f32.xlu0 %v1899
      %v1901 = vpop.xlane.xlu0 %1900
      %v1902 = vsel %vm1558, %v1828, 0.0
      %1903 = vadd.xlane.f32.xlu0 %v1902
      %v1904 = vpop.xlane.xlu0 %1903
      %v1905 = vsel %vm1558, %v1829, 0.0
      %1906 = vadd.xlane.f32.xlu0 %v1905
      %v1907 = vpop.xlane.xlu0 %1906
      %v1908 = vsel %vm1558, %v1830, 0.0
      %1909 = vadd.xlane.f32.xlu0 %v1908
      %v1910 = vpop.xlane.xlu0 %1909
      %v1911 = vsel %vm1558, %v1831, 0.0
      %1912 = vadd.xlane.f32.xlu0 %v1911
      %v1913 = vpop.xlane.xlu0 %1912
      %v1914 = vsel %vm1558, %v1832, 0.0
      %1915 = vadd.xlane.f32.xlu0 %v1914
      %v1916 = vpop.xlane.xlu0 %1915
      %v1917 = vsel %vm1558, %v1833, 0.0
      %1918 = vadd.xlane.f32.xlu0 %v1917
      %v1919 = vpop.xlane.xlu0 %1918
      %v1920 = vsel %vm1558, %v1834, 0.0
      %1921 = vadd.xlane.f32.xlu0 %v1920
      %v1922 = vpop.xlane.xlu0 %1921
      %v1923 = vsel %vm1558, %v1835, 0.0
      %1924 = vadd.xlane.f32.xlu0 %v1923
      %v1925 = vpop.xlane.xlu0 %1924
      %v1926 = vsel %vm1558, %v1836, 0.0
      %1927 = vadd.xlane.f32.xlu0 %v1926
      %v1928 = vpop.xlane.xlu0 %1927
      %v1929 = vsel %vm1558, %v1837, 0.0
      %1930 = vadd.xlane.f32.xlu0 %v1929
      %v1931 = vpop.xlane.xlu0 %1930
      %v1932 = vsel %vm1558, %v1838, 0.0
      %1933 = vadd.xlane.f32.xlu0 %v1932
      %v1934 = vpop.xlane.xlu0 %1933
      %v1935 = vld [vmem:[#allocation2] sm:$0x1]
      %v1937 = vlaneseq
      %v1938 = vshrl.u32 %v1937, 7
      %v1939 = vsub.s32 0, %v1938
      %v1940 = vrot.slane %v1935, %v1939
      %v1942 = vadd.f32 %v1841, %v1940
      %v1943 = vadd.f32 %v1844, %v1940
      %v1944 = vadd.f32 %v1847, %v1940
      %v1945 = vadd.f32 %v1850, %v1940
      %v1946 = vadd.f32 %v1853, %v1940
      %v1947 = vadd.f32 %v1856, %v1940
      %v1948 = vadd.f32 %v1859, %v1940
      %v1949 = vadd.f32 %v1862, %v1940
      %v1950 = vadd.f32 %v1865, %v1940
      %v1951 = vadd.f32 %v1868, %v1940
      %v1952 = vadd.f32 %v1871, %v1940
      %v1953 = vadd.f32 %v1874, %v1940
      %v1954 = vadd.f32 %v1877, %v1940
      %v1955 = vadd.f32 %v1880, %v1940
      %v1956 = vadd.f32 %v1883, %v1940
      %v1957 = vadd.f32 %v1886, %v1940
      %v1958 = vadd.f32 %v1889, %v1940
      %v1959 = vadd.f32 %v1892, %v1940
      %v1960 = vadd.f32 %v1895, %v1940
      %v1961 = vadd.f32 %v1898, %v1940
      %v1962 = vadd.f32 %v1901, %v1940
      %v1963 = vadd.f32 %v1904, %v1940
      %v1964 = vadd.f32 %v1907, %v1940
      %v1965 = vadd.f32 %v1910, %v1940
      %v1966 = vadd.f32 %v1913, %v1940
      %v1967 = vadd.f32 %v1916, %v1940
      %v1968 = vadd.f32 %v1919, %v1940
      %v1969 = vadd.f32 %v1922, %v1940
      %v1970 = vadd.f32 %v1925, %v1940
      %v1971 = vadd.f32 %v1928, %v1940
      %v1972 = vadd.f32 %v1931, %v1940
      %v1973 = vadd.f32 %v1934, %v1940
      %vm1974 = vcmask 7168
      %1975 = vst.msk [vmem:[%s434] sm:$0xff] %vm1974, %v1942
      %1976 = vst.msk [vmem:[%s434 + $0x8] sm:$0xff] %vm1974, %v1943
      %1977 = vst.msk [vmem:[%s434 + $0x10] sm:$0xff] %vm1974, %v1944
      %1978 = vst.msk [vmem:[%s434 + $0x18] sm:$0xff] %vm1974, %v1945
      %1979 = vst.msk [vmem:[%s434 + $0x20] sm:$0xff] %vm1974, %v1946
      %1980 = vst.msk [vmem:[%s434 + $0x28] sm:$0xff] %vm1974, %v1947
      %1981 = vst.msk [vmem:[%s434 + $0x30] sm:$0xff] %vm1974, %v1948
      %1982 = vst.msk [vmem:[%s434 + $0x38] sm:$0xff] %vm1974, %v1949
      %1983 = vst.msk [vmem:[%s434 + $0x40] sm:$0xff] %vm1974, %v1950
      %1984 = vst.msk [vmem:[%s434 + $0x48] sm:$0xff] %vm1974, %v1951
      %1985 = vst.msk [vmem:[%s434 + $0x50] sm:$0xff] %vm1974, %v1952
      %1986 = vst.msk [vmem:[%s434 + $0x58] sm:$0xff] %vm1974, %v1953
      %1987 = vst.msk [vmem:[%s434 + $0x60] sm:$0xff] %vm1974, %v1954
      %1988 = vst.msk [vmem:[%s434 + $0x68] sm:$0xff] %vm1974, %v1955
      %1989 = vst.msk [vmem:[%s434 + $0x70] sm:$0xff] %vm1974, %v1956
      %1990 = vst.msk [vmem:[%s434 + $0x78] sm:$0xff] %vm1974, %v1957
      %1991 = vst.msk [vmem:[%s434 + $0x80] sm:$0xff] %vm1974, %v1958
      %1992 = vst.msk [vmem:[%s434 + $0x88] sm:$0xff] %vm1974, %v1959
      %1993 = vst.msk [vmem:[%s434 + $0x90] sm:$0xff] %vm1974, %v1960
      %1994 = vst.msk [vmem:[%s434 + $0x98] sm:$0xff] %vm1974, %v1961
      %1995 = vst.msk [vmem:[%s434 + $0xa0] sm:$0xff] %vm1974, %v1962
      %1996 = vst.msk [vmem:[%s434 + $0xa8] sm:$0xff] %vm1974, %v1963
      %1997 = vst.msk [vmem:[%s434 + $0xb0] sm:$0xff] %vm1974, %v1964
      %1998 = vst.msk [vmem:[%s434 + $0xb8] sm:$0xff] %vm1974, %v1965
      %1999 = vst.msk [vmem:[%s434 + $0xc0] sm:$0xff] %vm1974, %v1966
      %2000 = vst.msk [vmem:[%s434 + $0xc8] sm:$0xff] %vm1974, %v1967
      %2001 = vst.msk [vmem:[%s434 + $0xd0] sm:$0xff] %vm1974, %v1968
      %2002 = vst.msk [vmem:[%s434 + $0xd8] sm:$0xff] %vm1974, %v1969
      %2003 = vst.msk [vmem:[%s434 + $0xe0] sm:$0xff] %vm1974, %v1970
      %2004 = vst.msk [vmem:[%s434 + $0xe8] sm:$0xff] %vm1974, %v1971
      %2005 = vst.msk [vmem:[%s434 + $0xf0] sm:$0xff] %vm1974, %v1972
      %2006 = vst.msk [vmem:[%s434 + $0xf8] sm:$0xff] %vm1974, %v1973
      %s2007 = smul.u32 32, %s24
      %p2008 = scmp.lt.s32.totalorder %s2007, 63
      %s2009 = scalar_select %p2008, %s2007, 63
      %s2010 = smul.addr %s2009, 8
      %s2011 = scalar_lea.vmem %s11, %s2010
      // Predicated region
      $region65: #{nu_nn_forward.1} parent=63 // pred_check
        %p2012 = pneg %p288
      $region66: #{nu_nn_forward.1} parent=63 // pred_check_branch
        %2014 = sbr.rel (%p2012) target = $region68
      $region67: #{nu_nn_forward.1} parent=63 // pred_region
        %s2015 = smul.u32 32, %s24
      $region68: #{nu_nn_forward.1} parent=63 // pred_fallthru
        _
    $region64: #{nu_nn_forward.1} parent=5 // pred_fallthru
      _
    %p2016 = scmp.le.s32.totalorder 2, %s19
    // Predicated region
    $region69: #{nu_nn_forward.1} parent=5 // pred_check
      %p2017 = pneg %p2016
    $region70: #{nu_nn_forward.1} parent=5 // pred_check_branch
      %2019 = sbr.rel (%p2017) target = $region72
    $region71: #{nu_nn_forward.1} parent=5 // pred_region
      %s2020 = ssub.s32 %s19, 2
      // Predicated region
      $region73: #{nu_nn_forward.1} parent=71 // pred_check
        %p2021 = pneg %p294
      $region74: #{nu_nn_forward.1} parent=71 // pred_check_branch
        %2023 = sbr.rel (%p2021) target = $region76
      $region75: #{nu_nn_forward.1} parent=71 // pred_region
        %s2024 = smul.u32 32, %s25
        %p2025 = scmp.lt.s32.totalorder %s2024, 63
        %s2026 = scalar_select %p2025, %s2024, 63
        %s2027 = smul.addr %s2026, 8
        %s2028 = scalar_lea.vmem %s11, %s2027
      $region76: #{nu_nn_forward.1} parent=71 // pred_fallthru
        _
    $region72: #{nu_nn_forward.1} parent=5 // pred_fallthru
      _
  $region6: #{nu_nn_forward.1} parent=0 // loop_footer
    %s23 = sadd.s32 1, %s19
  $region7: #{nu_nn_forward.1} parent=0 // loop_footer_branch
    %18 = sbr.rel target = $region3
  $region8: #{nu_nn_forward.1} parent=0 // loop_exit
    _

</llo_original>
